<compile_context>
chip_gen: v7x
topology: tpu7x:2x2x1
jax: 0.10.0
libtpu: 0.0.40
codegen_flags: <defaults>
</compile_context>

<pallas_src>
import jax
import jax.numpy as jnp
import numpy as np
from jax.experimental import pallas as pl
from jax.experimental.pallas import tpu as pltpu

KH = KW = 3
PAD = 2
CH_MULT = 3  # out_channels // groups  (96 // 32)


def _grouped_conv_silu_kernel(x_ref, w_ref, b_ref, v1_ref, v2_ref, v3_ref):
    # Channels-last blocks (batch dim squeezed out via block_shape=None):
    #   x_ref : (Hp, Wp, C_out)  padded input, pre-expanded to one plane per output
    #                            channel (lane axis = C_out = 96); full plane per batch
    #   w_ref : (KH, KW, C_out)  per-tap, per-output-channel weights (VMEM resident)
    #   b_ref : (1, 1, C_out)    bias (VMEM resident)
    #   v*_ref: (TH, Wo, C_out)  one horizontal output stripe of v1 / v2 / v3
    th, wo, c = v1_ref.shape

    # Row offset of this output stripe inside the padded input.
    h0 = pl.program_id(1) * th

    # Rows [h0, h0 + th + KH - 1) of the padded input cover this stripe exactly.
    xw = x_ref[pl.ds(h0, th + KH - 1), :, :]        # (th + 2, Wp, C)
    w_all = w_ref[...]                              # (KH, KW, C)

    # Bias-initialised accumulator; unrolled 3x3 shifted-window MAC on the VPU.
    # kh shifts: outer-dim slices (free); kw shifts: sublane-only slices;
    # channels stay pinned to the lane axis -> no cross-lane rotates.
    acc = jnp.zeros((th, wo, c), jnp.float32) + b_ref[...]
    for kh in range(KH):
        for kw in range(KW):
            acc = acc + w_all[kh, kw] * xw[kh:kh + th, kw:kw + wo, :]

    sig = jax.nn.sigmoid(acc)
    v1_ref[...] = acc
    v2_ref[...] = sig
    v3_ref[...] = acc * sig


def grouped_conv_silu(x, weight, bias):
    """x: (N, C_in, H, W); weight: (C_out, 1, KH, KW); bias: (C_out,).
    Returns (v1, v2, v3) in NCHW, matching the PyTorch module."""
    n, c_in, h, w = x.shape
    c_out = weight.shape[0]
    assert c_out == c_in * CH_MULT

    hp, wp = h + 2 * PAD, w + 2 * PAD
    ho, wo = hp - KH + 1, wp - KW + 1

    # Glue (plain XLA): NCHW -> NHWC, replicate each input channel CH_MULT times so
    # x_exp[..., o] is the input plane used by output channel o (o -> o // 3), pad.
    x_nhwc = jnp.transpose(x, (0, 2, 3, 1))                          # (N, H, W, C_in)
    x_exp = jnp.repeat(x_nhwc, CH_MULT, axis=-1)                     # (N, H, W, C_out)
    x_pad = jnp.pad(x_exp, ((0, 0), (PAD, PAD), (PAD, PAD), (0, 0)))  # (N, Hp, Wp, C_out)

    w_tap = jnp.transpose(weight.reshape(c_out, KH, KW), (1, 2, 0))  # (KH, KW, C_out)
    b3 = bias.reshape(1, 1, c_out)

    # Split output rows into 2 independent stripes when possible (>=2 parallel grid
    # steps even at N=1, so both v7x TensorCores are used; harmless on v5e/v6e).
    nh = 2 if (ho % 2 == 0) else 1
    th = ho // nh

    out_shape = jax.ShapeDtypeStruct((n, ho, wo, c_out), jnp.float32)
    out_spec = pl.BlockSpec((None, th, wo, c_out), lambda b, j: (b, j, 0, 0))

    v1, v2, v3 = pl.pallas_call(
        _grouped_conv_silu_kernel,
        grid=(n, nh),
        in_specs=[
            # Full padded plane per batch; same block index for every j -> no re-DMA.
            pl.BlockSpec((None, hp, wp, c_out), lambda b, j: (b, 0, 0, 0)),
            # Weights / bias: constant index_map -> resident across the whole grid.
            pl.BlockSpec((KH, KW, c_out), lambda b, j: (0, 0, 0)),
            pl.BlockSpec((1, 1, c_out), lambda b, j: (0, 0, 0)),
        ],
        out_specs=(out_spec, out_spec, out_spec),
        out_shape=(out_shape, out_shape, out_shape),
        compiler_params=pltpu.CompilerParams(
            dimension_semantics=("parallel", "parallel")),
    )(x_pad, w_tap, b3)

    # Back to NCHW for the module contract.
    to_nchw = lambda t: jnp.transpose(t, (0, 3, 1, 2))
    return to_nchw(v1), to_nchw(v2), to_nchw(v3)


if __name__ == "__main__":
    key = jax.random.PRNGKey(0)
    kx, kw_, kb = jax.random.split(key, 3)

    # Small shapes consistent with the module: channels fixed by the conv (32 -> 96).
    N, C_IN, H, W = 2, 32, 16, 16
    C_OUT = C_IN * CH_MULT

    x = jax.random.normal(kx, (N, C_IN, H, W), dtype=jnp.float32)

    # Deterministic PyTorch-like init: U(-k, k), k = 1/sqrt(fan_in), fan_in = 1*3*3.
    bound = 1.0 / np.sqrt(KH * KW)
    weight = jax.random.uniform(kw_, (C_OUT, 1, KH, KW), jnp.float32, -bound, bound)
    bias = jax.random.uniform(kb, (C_OUT,), jnp.float32, -bound, bound)

    v1, v2, v3 = grouped_conv_silu(x, weight, bias)
    jax.block_until_ready((v1, v2, v3))

    # Reference check against XLA's grouped conv.
    v1_ref = jax.lax.conv_general_dilated(
        x, weight, window_strides=(1, 1), padding=((PAD, PAD), (PAD, PAD)),
        dimension_numbers=("NCHW", "OIHW", "NCHW"),
        feature_group_count=C_IN) + bias.reshape(1, C_OUT, 1, 1)
    v2_ref = jax.nn.sigmoid(v1_ref)
    v3_ref = v1_ref * v2_ref

    assert v1.shape == (N, C_OUT, H + 2, W + 2)
    assert np.allclose(np.asarray(v1), np.asarray(v1_ref), atol=1e-4, rtol=1e-4)
    assert np.allclose(np.asarray(v2), np.asarray(v2_ref), atol=1e-5, rtol=1e-4)
    assert np.allclose(np.asarray(v3), np.asarray(v3_ref), atol=1e-4, rtol=1e-4)

    print("KERNEL_OK")
</pallas_src>

<mosaic_0001>
module attributes {stable_mosaic.version = 11 : i64} {
  func.func @_grouped_conv_silu_kernel(%arg0: i32, %arg1: i32, %arg2: memref<1x20x20x96xf32, #tpu.memory_space<vmem>>, %arg3: memref<3x3x96xf32, #tpu.memory_space<vmem>>, %arg4: memref<1x1x96xf32, #tpu.memory_space<vmem>>, %arg5: memref<1x9x18x96xf32, #tpu.memory_space<vmem>>, %arg6: memref<1x9x18x96xf32, #tpu.memory_space<vmem>>, %arg7: memref<1x9x18x96xf32, #tpu.memory_space<vmem>>) attributes {dimension_semantics = [#tpu.dimension_semantics<parallel>, #tpu.dimension_semantics<parallel>], iteration_bounds = array<i64: 2, 2>, scalar_prefetch = 0 : i64, scratch_operands = 0 : i64, tpu.core_type = #tpu.core_type<tc>, window_params = [{transform_indices = @transform_0, window_bounds = array<i64: 1, 20, 20, 96>}, {pipeline_mode = #tpu.pipeline_mode<synchronous>, transform_indices = @transform_1, window_bounds = array<i64: 3, 3, 96>}, {pipeline_mode = #tpu.pipeline_mode<synchronous>, transform_indices = @transform_2, window_bounds = array<i64: 1, 1, 96>}, {transform_indices = @transform_3, window_bounds = array<i64: 1, 9, 18, 96>}, {transform_indices = @transform_4, window_bounds = array<i64: 1, 9, 18, 96>}, {transform_indices = @transform_5, window_bounds = array<i64: 1, 9, 18, 96>}]} {
    %c9_i32 = arith.constant 9 : i32
    %0 = arith.muli %arg1, %c9_i32 : i32
    %c0 = arith.constant 0 : index
    %1 = arith.index_cast %0 : i32 to index
    %c0_0 = arith.constant 0 : index
    %c0_1 = arith.constant 0 : index
    %2 = vector.load %arg2[%c0, %1, %c0_0, %c0_1] : memref<1x20x20x96xf32, #tpu.memory_space<vmem>>, vector<1x11x20x96xf32>
    %3 = vector.shape_cast %2 : vector<1x11x20x96xf32> to vector<11x20x96xf32>
    %c0_2 = arith.constant 0 : index
    %c0_3 = arith.constant 0 : index
    %c0_4 = arith.constant 0 : index
    %4 = vector.load %arg3[%c0_2, %c0_3, %c0_4] : memref<3x3x96xf32, #tpu.memory_space<vmem>>, vector<3x3x96xf32>
    %cst = arith.constant 0.000000e+00 : f32
    %5 = vector.broadcast %cst : f32 to vector<9x18x96xf32>
    %c0_5 = arith.constant 0 : index
    %c0_6 = arith.constant 0 : index
    %c0_7 = arith.constant 0 : index
    %6 = vector.load %arg4[%c0_5, %c0_6, %c0_7] : memref<1x1x96xf32, #tpu.memory_space<vmem>>, vector<1x1x96xf32>
    %7 = vector.broadcast %6 : vector<1x1x96xf32> to vector<9x18x96xf32>
    %8 = arith.addf %5, %7 : vector<9x18x96xf32>
    %9 = vector.extract_strided_slice %4 {offsets = [0, 0, 0], sizes = [1, 1, 96], strides = [1, 1, 1]} : vector<3x3x96xf32> to vector<1x1x96xf32>
    %10 = vector.shape_cast %9 : vector<1x1x96xf32> to vector<96xf32>
    %11 = vector.extract_strided_slice %3 {offsets = [0, 0, 0], sizes = [9, 18, 96], strides = [1, 1, 1]} : vector<11x20x96xf32> to vector<9x18x96xf32>
    %12 = vector.shape_cast %10 : vector<96xf32> to vector<1x1x96xf32>
    %13 = vector.broadcast %12 : vector<1x1x96xf32> to vector<9x18x96xf32>
    %14 = arith.mulf %13, %11 : vector<9x18x96xf32>
    %15 = arith.addf %8, %14 : vector<9x18x96xf32>
    %16 = vector.extract_strided_slice %4 {offsets = [0, 1, 0], sizes = [1, 1, 96], strides = [1, 1, 1]} : vector<3x3x96xf32> to vector<1x1x96xf32>
    %17 = vector.shape_cast %16 : vector<1x1x96xf32> to vector<96xf32>
    %18 = vector.extract_strided_slice %3 {offsets = [0, 1, 0], sizes = [9, 18, 96], strides = [1, 1, 1]} : vector<11x20x96xf32> to vector<9x18x96xf32>
    %19 = vector.shape_cast %17 : vector<96xf32> to vector<1x1x96xf32>
    %20 = vector.broadcast %19 : vector<1x1x96xf32> to vector<9x18x96xf32>
    %21 = arith.mulf %20, %18 : vector<9x18x96xf32>
    %22 = arith.addf %15, %21 : vector<9x18x96xf32>
    %23 = vector.extract_strided_slice %4 {offsets = [0, 2, 0], sizes = [1, 1, 96], strides = [1, 1, 1]} : vector<3x3x96xf32> to vector<1x1x96xf32>
    %24 = vector.shape_cast %23 : vector<1x1x96xf32> to vector<96xf32>
    %25 = vector.extract_strided_slice %3 {offsets = [0, 2, 0], sizes = [9, 18, 96], strides = [1, 1, 1]} : vector<11x20x96xf32> to vector<9x18x96xf32>
    %26 = vector.shape_cast %24 : vector<96xf32> to vector<1x1x96xf32>
    %27 = vector.broadcast %26 : vector<1x1x96xf32> to vector<9x18x96xf32>
    %28 = arith.mulf %27, %25 : vector<9x18x96xf32>
    %29 = arith.addf %22, %28 : vector<9x18x96xf32>
    %30 = vector.extract_strided_slice %4 {offsets = [1, 0, 0], sizes = [1, 1, 96], strides = [1, 1, 1]} : vector<3x3x96xf32> to vector<1x1x96xf32>
    %31 = vector.shape_cast %30 : vector<1x1x96xf32> to vector<96xf32>
    %32 = vector.extract_strided_slice %3 {offsets = [1, 0, 0], sizes = [9, 18, 96], strides = [1, 1, 1]} : vector<11x20x96xf32> to vector<9x18x96xf32>
    %33 = vector.shape_cast %31 : vector<96xf32> to vector<1x1x96xf32>
    %34 = vector.broadcast %33 : vector<1x1x96xf32> to vector<9x18x96xf32>
    %35 = arith.mulf %34, %32 : vector<9x18x96xf32>
    %36 = arith.addf %29, %35 : vector<9x18x96xf32>
    %37 = vector.extract_strided_slice %4 {offsets = [1, 1, 0], sizes = [1, 1, 96], strides = [1, 1, 1]} : vector<3x3x96xf32> to vector<1x1x96xf32>
    %38 = vector.shape_cast %37 : vector<1x1x96xf32> to vector<96xf32>
    %39 = vector.extract_strided_slice %3 {offsets = [1, 1, 0], sizes = [9, 18, 96], strides = [1, 1, 1]} : vector<11x20x96xf32> to vector<9x18x96xf32>
    %40 = vector.shape_cast %38 : vector<96xf32> to vector<1x1x96xf32>
    %41 = vector.broadcast %40 : vector<1x1x96xf32> to vector<9x18x96xf32>
    %42 = arith.mulf %41, %39 : vector<9x18x96xf32>
    %43 = arith.addf %36, %42 : vector<9x18x96xf32>
    %44 = vector.extract_strided_slice %4 {offsets = [1, 2, 0], sizes = [1, 1, 96], strides = [1, 1, 1]} : vector<3x3x96xf32> to vector<1x1x96xf32>
    %45 = vector.shape_cast %44 : vector<1x1x96xf32> to vector<96xf32>
    %46 = vector.extract_strided_slice %3 {offsets = [1, 2, 0], sizes = [9, 18, 96], strides = [1, 1, 1]} : vector<11x20x96xf32> to vector<9x18x96xf32>
    %47 = vector.shape_cast %45 : vector<96xf32> to vector<1x1x96xf32>
    %48 = vector.broadcast %47 : vector<1x1x96xf32> to vector<9x18x96xf32>
    %49 = arith.mulf %48, %46 : vector<9x18x96xf32>
    %50 = arith.addf %43, %49 : vector<9x18x96xf32>
    %51 = vector.extract_strided_slice %4 {offsets = [2, 0, 0], sizes = [1, 1, 96], strides = [1, 1, 1]} : vector<3x3x96xf32> to vector<1x1x96xf32>
    %52 = vector.shape_cast %51 : vector<1x1x96xf32> to vector<96xf32>
    %53 = vector.extract_strided_slice %3 {offsets = [2, 0, 0], sizes = [9, 18, 96], strides = [1, 1, 1]} : vector<11x20x96xf32> to vector<9x18x96xf32>
    %54 = vector.shape_cast %52 : vector<96xf32> to vector<1x1x96xf32>
    %55 = vector.broadcast %54 : vector<1x1x96xf32> to vector<9x18x96xf32>
    %56 = arith.mulf %55, %53 : vector<9x18x96xf32>
    %57 = arith.addf %50, %56 : vector<9x18x96xf32>
    %58 = vector.extract_strided_slice %4 {offsets = [2, 1, 0], sizes = [1, 1, 96], strides = [1, 1, 1]} : vector<3x3x96xf32> to vector<1x1x96xf32>
    %59 = vector.shape_cast %58 : vector<1x1x96xf32> to vector<96xf32>
    %60 = vector.extract_strided_slice %3 {offsets = [2, 1, 0], sizes = [9, 18, 96], strides = [1, 1, 1]} : vector<11x20x96xf32> to vector<9x18x96xf32>
    %61 = vector.shape_cast %59 : vector<96xf32> to vector<1x1x96xf32>
    %62 = vector.broadcast %61 : vector<1x1x96xf32> to vector<9x18x96xf32>
    %63 = arith.mulf %62, %60 : vector<9x18x96xf32>
    %64 = arith.addf %57, %63 : vector<9x18x96xf32>
    %65 = vector.extract_strided_slice %4 {offsets = [2, 2, 0], sizes = [1, 1, 96], strides = [1, 1, 1]} : vector<3x3x96xf32> to vector<1x1x96xf32>
    %66 = vector.shape_cast %65 : vector<1x1x96xf32> to vector<96xf32>
    %67 = vector.extract_strided_slice %3 {offsets = [2, 2, 0], sizes = [9, 18, 96], strides = [1, 1, 1]} : vector<11x20x96xf32> to vector<9x18x96xf32>
    %68 = vector.shape_cast %66 : vector<96xf32> to vector<1x1x96xf32>
    %69 = vector.broadcast %68 : vector<1x1x96xf32> to vector<9x18x96xf32>
    %70 = arith.mulf %69, %67 : vector<9x18x96xf32>
    %71 = arith.addf %64, %70 : vector<9x18x96xf32>
    %72 = arith.negf %71 : vector<9x18x96xf32>
    %73 = math.exp %72 : vector<9x18x96xf32>
    %cst_8 = arith.constant 1.000000e+00 : f32
    %74 = vector.broadcast %cst_8 : f32 to vector<9x18x96xf32>
    %75 = arith.addf %74, %73 : vector<9x18x96xf32>
    %76 = arith.divf %74, %75 : vector<9x18x96xf32>
    %c0_9 = arith.constant 0 : index
    %c0_10 = arith.constant 0 : index
    %c0_11 = arith.constant 0 : index
    %c0_12 = arith.constant 0 : index
    %77 = vector.load %arg5[%c0_9, %c0_10, %c0_11, %c0_12] : memref<1x9x18x96xf32, #tpu.memory_space<vmem>>, vector<1x9x18x96xf32>
    %78 = vector.shape_cast %77 : vector<1x9x18x96xf32> to vector<9x18x96xf32>
    %79 = vector.shape_cast %71 : vector<9x18x96xf32> to vector<1x9x18x96xf32>
    tpu.vector_store %arg5[%c0_9, %c0_10, %c0_11, %c0_12], %79 {strides = array<i32>} : memref<1x9x18x96xf32, #tpu.memory_space<vmem>>, vector<1x9x18x96xf32>,
    %c0_13 = arith.constant 0 : index
    %c0_14 = arith.constant 0 : index
    %c0_15 = arith.constant 0 : index
    %c0_16 = arith.constant 0 : index
    %80 = vector.load %arg6[%c0_13, %c0_14, %c0_15, %c0_16] : memref<1x9x18x96xf32, #tpu.memory_space<vmem>>, vector<1x9x18x96xf32>
    %81 = vector.shape_cast %80 : vector<1x9x18x96xf32> to vector<9x18x96xf32>
    %82 = vector.shape_cast %76 : vector<9x18x96xf32> to vector<1x9x18x96xf32>
    tpu.vector_store %arg6[%c0_13, %c0_14, %c0_15, %c0_16], %82 {strides = array<i32>} : memref<1x9x18x96xf32, #tpu.memory_space<vmem>>, vector<1x9x18x96xf32>,
    %83 = arith.mulf %71, %76 : vector<9x18x96xf32>
    %c0_17 = arith.constant 0 : index
    %c0_18 = arith.constant 0 : index
    %c0_19 = arith.constant 0 : index
    %c0_20 = arith.constant 0 : index
    %84 = vector.load %arg7[%c0_17, %c0_18, %c0_19, %c0_20] : memref<1x9x18x96xf32, #tpu.memory_space<vmem>>, vector<1x9x18x96xf32>
    %85 = vector.shape_cast %84 : vector<1x9x18x96xf32> to vector<9x18x96xf32>
    %86 = vector.shape_cast %83 : vector<9x18x96xf32> to vector<1x9x18x96xf32>
    tpu.vector_store %arg7[%c0_17, %c0_18, %c0_19, %c0_20], %86 {strides = array<i32>} : memref<1x9x18x96xf32, #tpu.memory_space<vmem>>, vector<1x9x18x96xf32>,
    return
  }
  func.func @transform_0(%arg0: i32, %arg1: i32) -> (i32, i32, i32, i32) {
    %c0_i32 = arith.constant 0 : i32
    %c0_i32_0 = arith.constant 0 : i32
    %c0_i32_1 = arith.constant 0 : i32
    %c0_i32_2 = arith.constant 0 : i32
    return %arg0, %c0_i32, %c0_i32_0, %c0_i32_1 : i32, i32, i32, i32
  }
  func.func @transform_1(%arg0: i32, %arg1: i32) -> (i32, i32, i32) {
    %c0_i32 = arith.constant 0 : i32
    %c0_i32_0 = arith.constant 0 : i32
    %c0_i32_1 = arith.constant 0 : i32
    %c0_i32_2 = arith.constant 0 : i32
    return %c0_i32, %c0_i32_0, %c0_i32_1 : i32, i32, i32
  }
  func.func @transform_2(%arg0: i32, %arg1: i32) -> (i32, i32, i32) {
    %c0_i32 = arith.constant 0 : i32
    %c0_i32_0 = arith.constant 0 : i32
    %c0_i32_1 = arith.constant 0 : i32
    %c0_i32_2 = arith.constant 0 : i32
    return %c0_i32, %c0_i32_0, %c0_i32_1 : i32, i32, i32
  }
  func.func @transform_3(%arg0: i32, %arg1: i32) -> (i32, i32, i32, i32) {
    %c0_i32 = arith.constant 0 : i32
    %c0_i32_0 = arith.constant 0 : i32
    %c0_i32_1 = arith.constant 0 : i32
    return %arg0, %arg1, %c0_i32, %c0_i32_0 : i32, i32, i32, i32
  }
  func.func @transform_4(%arg0: i32, %arg1: i32) -> (i32, i32, i32, i32) {
    %c0_i32 = arith.constant 0 : i32
    %c0_i32_0 = arith.constant 0 : i32
    %c0_i32_1 = arith.constant 0 : i32
    return %arg0, %arg1, %c0_i32, %c0_i32_0 : i32, i32, i32, i32
  }
  func.func @transform_5(%arg0: i32, %arg1: i32) -> (i32, i32, i32, i32) {
    %c0_i32 = arith.constant 0 : i32
    %c0_i32_0 = arith.constant 0 : i32
    %c0_i32_1 = arith.constant 0 : i32
    return %arg0, %arg1, %c0_i32, %c0_i32_0 : i32, i32, i32, i32
  }
}

</mosaic_0001>

<llo_original>
// kernel: tpu_custom_call.1
$region0: #{tpu_custom_call.1}
  #allocation0 [shape = 'u32[]', space=smem, size = 0x4, offset = 0x4, fixed_abs, tag = 'smem constant byte address 0x4 - core index']
  #allocation1 [shape = 'u32[144,128]{1,0:T(1,128)}', space=vmem, size = 0x12000, scoped, tag = 'internal scratch']
  %s0 = inlined_call_operand.vmem [shape: f32[2,20,20,96], index: 0, kind: input, shape index: {}]
  %s1 = inlined_call_operand.vmem [shape: f32[3,3,96], index: 1, kind: input, shape index: {}]
  %s2 = inlined_call_operand.vmem [shape: f32[1,1,96], index: 2, kind: input, shape index: {}]
  %s3 = inlined_call_operand.vmem [shape: f32[2,18,18,96], index: 3, kind: output, shape index: {0}]
  %s4 = inlined_call_operand.vmem [shape: f32[2,18,18,96], index: 4, kind: output, shape index: {1}]
  %s5 = inlined_call_operand.vmem [shape: f32[2,18,18,96], index: 5, kind: output, shape index: {2}]
  %6 = xla_tuple %s3, %s4, %s5
  %s7 = sld [smem:[#allocation0]]
  $region61: #{tpu_custom_call.1} parent=0
    _
  %s9 = ssub.s32 1, %s7
  %s10 = scalar_select 0, %s9, %s7
  loop: start=0, step=1, limit=6
  $region2: #{tpu_custom_call.1} parent=0 // loop_pre_header
    _
  $region3: #{tpu_custom_call.1} parent=0 // loop_header
    %s12 = sphi 0, %s16
    %p13 = scmp.ge.s32.totalorder %s12, 6
    %s19 = sphi 0, %s31
    %s20 = sphi 0, %s27
    %s21 = sphi 0, %s19
    %s22 = sphi 0, %s20
    %s23 = sphi 0, %s21
    %s24 = sphi 0, %s22
    %s34 = sphi 0, %s36
    %s37 = sphi 0, %s34
    %s38 = sphi 0, %s37
    %s54 = sphi 0, %s38
    %s58 = sphi 0, %s58
    %s60 = sphi 0, %s58
    %s61 = sphi 0, %s60
    %s75 = sphi 0, %s61
    %s79 = sphi 0, %s79
    %s81 = sphi 0, %s79
    %s82 = sphi 0, %s81
    %s96 = sphi 0, %s82
    %s104 = sphi 0, %s106
    %s107 = sphi 0, %s104
    %s108 = sphi 0, %s107
    %s124 = sphi 0, %s108
    %s132 = sphi 0, %s134
    %s135 = sphi 0, %s132
    %s136 = sphi 0, %s135
    %s152 = sphi 0, %s136
    %s160 = sphi 0, %s162
    %s163 = sphi 0, %s160
    %s164 = sphi 0, %s163
    %s180 = sphi 0, %s164
  $region4: #{tpu_custom_call.1} parent=0 // loop_header_branch
    %15 = sbr.rel (%p13) target = $region8
  $region5: #{tpu_custom_call.1} parent=0 // loop_body
    %s17 = ssub.s32 %s12, 1
    %s18 = ssub.s32 %s12, 2
    %s25 = sadd.s32 1, %s20
    %p26 = scmp.ge.s32.totalorder %s25, 2
    %s27 = scalar_select %p26, 0, %s25
    %s28 = sadd.s32 1, %s19
    %s29 = scalar_select %p26, %s28, %s19
    %p30 = scmp.ge.s32.totalorder %s29, 2
    %s31 = scalar_select %p30, 0, %s29
    %s32 = ssub.s32 %s19, %s31
    %p33 = scmp.eq.s32.totalorder %s32, 0
    %s35 = sadd.s32 %s34, 1
    %s36 = scalar_select %p33, %s34, %s35
    %p39 = pneg %p33
    %p40 = scmp.eq.s32.totalorder %s12, 3
    %p41 = por %p39, %p40
    %p42 = scmp.ne.s32.totalorder %s34, %s37
    %p43 = scmp.eq.s32.totalorder %s12, 0
    %p44 = por %p42, %p43
    %p45 = scmp.ne.s32.totalorder %s34, %s37
    %p46 = scmp.eq.s32.totalorder %s17, 3
    %p47 = por %p45, %p46
    %p48 = scmp.ne.s32.totalorder %s37, %s38
    %p49 = scmp.eq.s32.totalorder %s17, 0
    %p50 = por %p48, %p49
    %p51 = scmp.ne.s32.totalorder %s37, %s38
    %p52 = scmp.eq.s32.totalorder %s18, 3
    %p53 = por %p51, %p52
    %p55 = scmp.ne.s32.totalorder %s38, %s54
    %p56 = scmp.eq.s32.totalorder %s18, 0
    %p57 = por %p55, %p56
    %s59 = sadd.s32 %s58, 1
    %p62 = scmp.eq.s32.totalorder %s12, 3
    %p63 = scmp.ne.s32.totalorder %s58, %s60
    %p64 = scmp.eq.s32.totalorder %s12, 0
    %p65 = por %p63, %p64
    %p66 = scmp.ne.s32.totalorder %s58, %s60
    %p67 = scmp.eq.s32.totalorder %s17, 3
    %p68 = por %p66, %p67
    %p69 = scmp.ne.s32.totalorder %s60, %s61
    %p70 = scmp.eq.s32.totalorder %s17, 0
    %p71 = por %p69, %p70
    %p72 = scmp.ne.s32.totalorder %s60, %s61
    %p73 = scmp.eq.s32.totalorder %s18, 3
    %p74 = por %p72, %p73
    %p76 = scmp.ne.s32.totalorder %s61, %s75
    %p77 = scmp.eq.s32.totalorder %s18, 0
    %p78 = por %p76, %p77
    %s80 = sadd.s32 %s79, 1
    %p83 = scmp.eq.s32.totalorder %s12, 3
    %p84 = scmp.ne.s32.totalorder %s79, %s81
    %p85 = scmp.eq.s32.totalorder %s12, 0
    %p86 = por %p84, %p85
    %p87 = scmp.ne.s32.totalorder %s79, %s81
    %p88 = scmp.eq.s32.totalorder %s17, 3
    %p89 = por %p87, %p88
    %p90 = scmp.ne.s32.totalorder %s81, %s82
    %p91 = scmp.eq.s32.totalorder %s17, 0
    %p92 = por %p90, %p91
    %p93 = scmp.ne.s32.totalorder %s81, %s82
    %p94 = scmp.eq.s32.totalorder %s18, 3
    %p95 = por %p93, %p94
    %p97 = scmp.ne.s32.totalorder %s82, %s96
    %p98 = scmp.eq.s32.totalorder %s18, 0
    %p99 = por %p97, %p98
    %s100 = ssub.s32 %s19, %s31
    %s101 = ssub.s32 %s20, %s27
    %s102 = sor.u32 %s100, %s101
    %p103 = scmp.eq.s32.totalorder %s102, 0
    %s105 = sadd.s32 %s104, 1
    %s106 = scalar_select %p103, %s104, %s105
    %p109 = pneg %p103
    %p110 = scmp.eq.s32.totalorder %s12, 3
    %p111 = por %p109, %p110
    %p112 = scmp.ne.s32.totalorder %s104, %s107
    %p113 = scmp.eq.s32.totalorder %s12, 0
    %p114 = por %p112, %p113
    %p115 = scmp.ne.s32.totalorder %s104, %s107
    %p116 = scmp.eq.s32.totalorder %s17, 3
    %p117 = por %p115, %p116
    %p118 = scmp.ne.s32.totalorder %s107, %s108
    %p119 = scmp.eq.s32.totalorder %s17, 0
    %p120 = por %p118, %p119
    %p121 = scmp.ne.s32.totalorder %s107, %s108
    %p122 = scmp.eq.s32.totalorder %s18, 3
    %p123 = por %p121, %p122
    %p125 = scmp.ne.s32.totalorder %s108, %s124
    %p126 = scmp.eq.s32.totalorder %s18, 0
    %p127 = por %p125, %p126
    %s128 = ssub.s32 %s19, %s31
    %s129 = ssub.s32 %s20, %s27
    %s130 = sor.u32 %s128, %s129
    %p131 = scmp.eq.s32.totalorder %s130, 0
    %s133 = sadd.s32 %s132, 1
    %s134 = scalar_select %p131, %s132, %s133
    %p137 = pneg %p131
    %p138 = scmp.eq.s32.totalorder %s12, 3
    %p139 = por %p137, %p138
    %p140 = scmp.ne.s32.totalorder %s132, %s135
    %p141 = scmp.eq.s32.totalorder %s12, 0
    %p142 = por %p140, %p141
    %p143 = scmp.ne.s32.totalorder %s132, %s135
    %p144 = scmp.eq.s32.totalorder %s17, 3
    %p145 = por %p143, %p144
    %p146 = scmp.ne.s32.totalorder %s135, %s136
    %p147 = scmp.eq.s32.totalorder %s17, 0
    %p148 = por %p146, %p147
    %p149 = scmp.ne.s32.totalorder %s135, %s136
    %p150 = scmp.eq.s32.totalorder %s18, 3
    %p151 = por %p149, %p150
    %p153 = scmp.ne.s32.totalorder %s136, %s152
    %p154 = scmp.eq.s32.totalorder %s18, 0
    %p155 = por %p153, %p154
    %s156 = ssub.s32 %s19, %s31
    %s157 = ssub.s32 %s20, %s27
    %s158 = sor.u32 %s156, %s157
    %p159 = scmp.eq.s32.totalorder %s158, 0
    %s161 = sadd.s32 %s160, 1
    %s162 = scalar_select %p159, %s160, %s161
    %p165 = pneg %p159
    %p166 = scmp.eq.s32.totalorder %s12, 3
    %p167 = por %p165, %p166
    %p168 = scmp.ne.s32.totalorder %s160, %s163
    %p169 = scmp.eq.s32.totalorder %s12, 0
    %p170 = por %p168, %p169
    %p171 = scmp.ne.s32.totalorder %s160, %s163
    %p172 = scmp.eq.s32.totalorder %s17, 3
    %p173 = por %p171, %p172
    %p174 = scmp.ne.s32.totalorder %s163, %s164
    %p175 = scmp.eq.s32.totalorder %s17, 0
    %p176 = por %p174, %p175
    %p177 = scmp.ne.s32.totalorder %s163, %s164
    %p178 = scmp.eq.s32.totalorder %s18, 3
    %p179 = por %p177, %p178
    %p181 = scmp.ne.s32.totalorder %s164, %s180
    %p182 = scmp.eq.s32.totalorder %s18, 0
    %p183 = por %p181, %p182
    %p184 = scmp.le.s32.totalorder 1, %s12
    %p185 = scmp.lt.s32.totalorder %s12, 5
    %p186 = pnand %p184, %p185
    %p187 = pneg %p186
    // Predicated region
    $region9: #{tpu_custom_call.1} parent=5 // pred_check
      _
    $region10: #{tpu_custom_call.1} parent=5 // pred_check_branch
      %189 = sbr.rel (%p186) target = $region12
    $region11: #{tpu_custom_call.1} parent=5 // pred_region
      %s190 = ssub.s32 %s12, 1
      // Predicated region
      $region13: #{tpu_custom_call.1} parent=11 // pred_check
        %p191 = pneg %p71
      $region14: #{tpu_custom_call.1} parent=11 // pred_check_branch
        %193 = sbr.rel (%p191) target = $region16
      $region15: #{tpu_custom_call.1} parent=11 // pred_region
        _
      $region16: #{tpu_custom_call.1} parent=11 // pred_fallthru
        _
      // Predicated region
      $region17: #{tpu_custom_call.1} parent=11 // pred_check
        %p194 = pneg %p92
      $region18: #{tpu_custom_call.1} parent=11 // pred_check_branch
        %196 = sbr.rel (%p194) target = $region20
      $region19: #{tpu_custom_call.1} parent=11 // pred_region
        _
      $region20: #{tpu_custom_call.1} parent=11 // pred_fallthru
        _
    $region12: #{tpu_custom_call.1} parent=5 // pred_fallthru
      _
    %p197 = scmp.lt.s32.totalorder %s12, 4
    // Predicated region
    $region21: #{tpu_custom_call.1} parent=5 // pred_check
      %p198 = pneg %p197
    $region22: #{tpu_custom_call.1} parent=5 // pred_check_branch
      %200 = sbr.rel (%p198) target = $region24
    $region23: #{tpu_custom_call.1} parent=5 // pred_region
      // Predicated region
      $region25: #{tpu_custom_call.1} parent=23 // pred_check
        %p201 = pneg %p44
      $region26: #{tpu_custom_call.1} parent=23 // pred_check_branch
        %203 = sbr.rel (%p201) target = $region28
      $region27: #{tpu_custom_call.1} parent=23 // pred_region
        %p204 = scmp.lt.s32.totalorder %s19, 1
        %s205 = scalar_select %p204, %s19, 1
        %s206 = smul.addr %s205, 60
        %s207 = smul.addr %s206, 8
        %s208 = scalar_lea.vmem %s0, %s207
      $region28: #{tpu_custom_call.1} parent=23 // pred_fallthru
        _
    $region24: #{tpu_custom_call.1} parent=5 // pred_fallthru
      _
    %p209 = scmp.le.s32.totalorder 1, %s12
    %p210 = scmp.lt.s32.totalorder %s12, 5
    %p211 = pnand %p209, %p210
    %p212 = pneg %p211
    // Predicated region
    $region29: #{tpu_custom_call.1} parent=5 // pred_check
      _
    $region30: #{tpu_custom_call.1} parent=5 // pred_check_branch
      %214 = sbr.rel (%p211) target = $region32
    $region31: #{tpu_custom_call.1} parent=5 // pred_region
      %s215 = ssub.s32 %s12, 1
      %p216 = scmp.lt.s32.totalorder %s21, 1
      %s217 = scalar_select %p216, %s21, 1
      %s218 = smul.addr %s217, 60
      %s219 = smul.addr %s218, 8
      %s220 = scalar_lea.vmem %s0, %s219
      %p221 = pneg %p50
      %p222 = pneg %p47
      %p223 = pneg %p71
      %p224 = pneg %p68
      %p225 = pneg %p92
      %p226 = pneg %p89
      %p227 = pneg %p120
      %p228 = pneg %p117
      %s229 = smul.u32 9, %s22
      %p230 = scmp.lt.s32.totalorder %s21, 1
      %s231 = scalar_select %p230, %s21, 1
      %p232 = scmp.lt.s32.totalorder %s229, 17
      %s233 = scalar_select %p232, %s229, 17
      %s234 = smul.addr %s233, 3
      %s235 = smul.addr %s231, 54
      %s236 = sadd.s32 %s234, %s235
      %s237 = smul.addr %s236, 8
      %s238 = scalar_lea.vmem %s3, %s237
      %p239 = pneg %p148
      %p240 = pneg %p145
      %s241 = smul.u32 9, %s22
      %p242 = scmp.lt.s32.totalorder %s21, 1
      %s243 = scalar_select %p242, %s21, 1
      %p244 = scmp.lt.s32.totalorder %s241, 17
      %s245 = scalar_select %p244, %s241, 17
      %s246 = smul.addr %s245, 3
      %s247 = smul.addr %s243, 54
      %s248 = sadd.s32 %s246, %s247
      %s249 = smul.addr %s248, 8
      %s250 = scalar_lea.vmem %s4, %s249
      %p251 = pneg %p176
      %p252 = pneg %p173
      %s253 = smul.u32 9, %s22
      %p254 = scmp.lt.s32.totalorder %s21, 1
      %s255 = scalar_select %p254, %s21, 1
      %p256 = scmp.lt.s32.totalorder %s253, 17
      %s257 = scalar_select %p256, %s253, 17
      %s258 = smul.addr %s257, 3
      %s259 = smul.addr %s255, 54
      %s260 = sadd.s32 %s258, %s259
      %s261 = smul.addr %s260, 8
      %s262 = scalar_lea.vmem %s5, %s261
      %p263 = scmp.lt.s32.totalorder %s21, 1
      %s264 = scalar_select %p263, %s21, 1
      %s265 = smul.addr %s264, 60
      %s266 = smul.addr %s265, 8
      %s267 = scalar_lea.vmem %s0, %s266
      %s268 = smul.u32 9, %s22
      %p269 = scmp.lt.s32.totalorder %s21, 1
      %s270 = scalar_select %p269, %s21, 1
      %p271 = scmp.lt.s32.totalorder %s268, 17
      %s272 = scalar_select %p271, %s268, 17
      %s273 = smul.addr %s272, 3
      %s274 = smul.addr %s270, 54
      %s275 = sadd.s32 %s273, %s274
      %s276 = smul.addr %s275, 8
      %s277 = scalar_lea.vmem %s3, %s276
      %s278 = smul.u32 9, %s22
      %s279 = smul.u32 9, %s22
      %p280 = scmp.lt.s32.totalorder %s21, 1
      %s281 = scalar_select %p280, %s21, 1
      %p282 = scmp.lt.s32.totalorder %s279, 17
      %s283 = scalar_select %p282, %s279, 17
      %s284 = smul.addr %s283, 3
      %s285 = smul.addr %s281, 54
      %s286 = sadd.s32 %s284, %s285
      %s287 = smul.addr %s286, 8
      %s288 = scalar_lea.vmem %s4, %s287
      %s289 = smul.u32 9, %s22
      %s290 = smul.u32 9, %s22
      %p291 = scmp.lt.s32.totalorder %s21, 1
      %s292 = scalar_select %p291, %s21, 1
      %p293 = scmp.lt.s32.totalorder %s290, 17
      %s294 = scalar_select %p293, %s290, 17
      %s295 = smul.addr %s294, 3
      %s296 = smul.addr %s292, 54
      %s297 = sadd.s32 %s295, %s296
      %s298 = smul.addr %s297, 8
      %s299 = scalar_lea.vmem %s5, %s298
      %s300 = smul.u32 9, %s22
      %s301 = smul.u32 %s22, 9
      %s302 = smul.u32 %s301, 24
      %s303 = scalar_lea.vmem %s267, %s302
      %v304 = vld [vmem:[%s303] sm:$0xff]
      %v305 = vld [vmem:[%s303 + $0x8] sm:$0xff]
      %v306 = vld [vmem:[%s303 + $0x10] sm:$0xf]
      %v307 = vld [vmem:[%s303 + $0x18] sm:$0xff]
      %v308 = vld [vmem:[%s303 + $0x20] sm:$0xff]
      %v309 = vld [vmem:[%s303 + $0x28] sm:$0xf]
      %v310 = vld [vmem:[%s303 + $0x30] sm:$0xff]
      %v311 = vld [vmem:[%s303 + $0x38] sm:$0xff]
      %v312 = vld [vmem:[%s303 + $0x40] sm:$0xf]
      %v313 = vld [vmem:[%s303 + $0x48] sm:$0xff]
      %v314 = vld [vmem:[%s303 + $0x50] sm:$0xff]
      %v315 = vld [vmem:[%s303 + $0x58] sm:$0xf]
      %v316 = vld [vmem:[%s303 + $0x60] sm:$0xff]
      %v317 = vld [vmem:[%s303 + $0x68] sm:$0xff]
      %v318 = vld [vmem:[%s303 + $0x70] sm:$0xf]
      %v319 = vld [vmem:[%s303 + $0x78] sm:$0xff]
      %v320 = vld [vmem:[%s303 + $0x80] sm:$0xff]
      %v321 = vld [vmem:[%s303 + $0x88] sm:$0xf]
      %v322 = vld [vmem:[%s303 + $0x90] sm:$0xff]
      %v323 = vld [vmem:[%s303 + $0x98] sm:$0xff]
      %v324 = vld [vmem:[%s303 + $0xa0] sm:$0xf]
      %v325 = vld [vmem:[%s303 + $0xa8] sm:$0xff]
      %v326 = vld [vmem:[%s303 + $0xb0] sm:$0xff]
      %v327 = vld [vmem:[%s303 + $0xb8] sm:$0xf]
      %v328 = vld [vmem:[%s303 + $0xc0] sm:$0xff]
      %v329 = vld [vmem:[%s303 + $0xc8] sm:$0xff]
      %v330 = vld [vmem:[%s303 + $0xd0] sm:$0xf]
      %v331 = vld [vmem:[%s303 + $0xd8] sm:$0xff]
      %v332 = vld [vmem:[%s303 + $0xe0] sm:$0xff]
      %v333 = vld [vmem:[%s303 + $0xe8] sm:$0xf]
      %v334 = vld [vmem:[%s303 + $0xf0] sm:$0xff]
      %v335 = vld [vmem:[%s303 + $0xf8] sm:$0xff]
      %v336 = vld [vmem:[%s303 + $0x100] sm:$0xf]
      %v337 = vld [vmem:[%s1] sm:$0x7]
      %v338 = vld [vmem:[%s1 + $0x4] sm:$0x7]
      %v339 = vld [vmem:[%s1 + $0x8] sm:$0x7]
      %v340 = vld [vmem:[%s2] sm:$0x1]
      %v342 = vlaneseq
      %v343 = vshrl.u32 %v342, 7
      %v344 = vsub.s32 0, %v343
      %v345 = vrot.slane %v340, %v344
      %v347 = vadd.f32 %v345, 0.0
      %v348 = vlaneseq
      %v349 = vshrl.u32 %v348, 7
      %v350 = vsub.s32 0, %v349
      %v351 = vrot.slane %v337, %v350
      %v352 = vmul.f32 %v351, %v304
      %v353 = vmul.f32 %v351, %v305
      %v354 = vmul.f32 %v351, %v306
      %v355 = vmul.f32 %v351, %v307
      %v356 = vmul.f32 %v351, %v308
      %v357 = vmul.f32 %v351, %v309
      %v358 = vmul.f32 %v351, %v310
      %v359 = vmul.f32 %v351, %v311
      %v360 = vmul.f32 %v351, %v312
      %v361 = vmul.f32 %v351, %v313
      %v362 = vmul.f32 %v351, %v314
      %v363 = vmul.f32 %v351, %v315
      %v364 = vmul.f32 %v351, %v316
      %v365 = vmul.f32 %v351, %v317
      %v366 = vmul.f32 %v351, %v318
      %v367 = vmul.f32 %v351, %v319
      %v368 = vmul.f32 %v351, %v320
      %v369 = vmul.f32 %v351, %v321
      %v370 = vmul.f32 %v351, %v322
      %v371 = vmul.f32 %v351, %v323
      %v372 = vmul.f32 %v351, %v324
      %v373 = vmul.f32 %v351, %v325
      %v374 = vmul.f32 %v351, %v326
      %v375 = vmul.f32 %v351, %v327
      %v376 = vmul.f32 %v351, %v328
      %v377 = vmul.f32 %v351, %v329
      %v378 = vmul.f32 %v351, %v330
      %v379 = vadd.f32 %v347, %v352
      %v380 = vadd.f32 %v347, %v353
      %v381 = vadd.f32 %v347, %v354
      %v382 = vadd.f32 %v347, %v355
      %v383 = vadd.f32 %v347, %v356
      %v384 = vadd.f32 %v347, %v357
      %v385 = vadd.f32 %v347, %v358
      %v386 = vadd.f32 %v347, %v359
      %v387 = vadd.f32 %v347, %v360
      %v388 = vadd.f32 %v347, %v361
      %v389 = vadd.f32 %v347, %v362
      %v390 = vadd.f32 %v347, %v363
      %v391 = vadd.f32 %v347, %v364
      %v392 = vadd.f32 %v347, %v365
      %v393 = vadd.f32 %v347, %v366
      %v394 = vadd.f32 %v347, %v367
      %v395 = vadd.f32 %v347, %v368
      %v396 = vadd.f32 %v347, %v369
      %v397 = vadd.f32 %v347, %v370
      %v398 = vadd.f32 %v347, %v371
      %v399 = vadd.f32 %v347, %v372
      %v400 = vadd.f32 %v347, %v373
      %v401 = vadd.f32 %v347, %v374
      %v402 = vadd.f32 %v347, %v375
      %v403 = vadd.f32 %v347, %v376
      %v404 = vadd.f32 %v347, %v377
      %v405 = vadd.f32 %v347, %v378
      %v406 = vlaneseq
      %v407 = vshrl.u32 %v406, 7
      %v408 = vsub.s32 1, %v407
      %v409 = vrot.slane %v337, %v408
      %v410 = vmul.f32 %v409, %v304
      %v411 = vmul.f32 %v409, %v305
      %v412 = vmul.f32 %v409, %v306
      %v413 = vmul.f32 %v409, %v307
      %v414 = vmul.f32 %v409, %v308
      %v415 = vmul.f32 %v409, %v309
      %v416 = vmul.f32 %v409, %v310
      %v417 = vmul.f32 %v409, %v311
      %v418 = vmul.f32 %v409, %v312
      %v419 = vmul.f32 %v409, %v313
      %v420 = vmul.f32 %v409, %v314
      %v421 = vmul.f32 %v409, %v315
      %v422 = vmul.f32 %v409, %v316
      %v423 = vmul.f32 %v409, %v317
      %v424 = vmul.f32 %v409, %v318
      %v425 = vmul.f32 %v409, %v319
      %v426 = vmul.f32 %v409, %v320
      %v427 = vmul.f32 %v409, %v321
      %v428 = vmul.f32 %v409, %v322
      %v429 = vmul.f32 %v409, %v323
      %v430 = vmul.f32 %v409, %v324
      %v431 = vmul.f32 %v409, %v325
      %v432 = vmul.f32 %v409, %v326
      %v433 = vmul.f32 %v409, %v327
      %v434 = vmul.f32 %v409, %v328
      %v435 = vmul.f32 %v409, %v329
      %v436 = vmul.f32 %v409, %v330
      %vm464 = vcmask 1046528
      %v465 = vrot.slane %v410, 1
      %v466 = vrot.slane %v411, 1
      %v467 = vsel %vm464, %v465, %v466
      %v468 = vrot.slane %v412, 1
      %v469 = vsel %vm464, %v466, %v468
      %v470 = vrot.slane %v413, 1
      %v471 = vrot.slane %v414, 1
      %v472 = vsel %vm464, %v470, %v471
      %v473 = vrot.slane %v415, 1
      %v474 = vsel %vm464, %v471, %v473
      %v475 = vrot.slane %v416, 1
      %v476 = vrot.slane %v417, 1
      %v477 = vsel %vm464, %v475, %v476
      %v478 = vrot.slane %v418, 1
      %v479 = vsel %vm464, %v476, %v478
      %v480 = vrot.slane %v419, 1
      %v481 = vrot.slane %v420, 1
      %v482 = vsel %vm464, %v480, %v481
      %v483 = vrot.slane %v421, 1
      %v484 = vsel %vm464, %v481, %v483
      %v485 = vrot.slane %v422, 1
      %v486 = vrot.slane %v423, 1
      %v487 = vsel %vm464, %v485, %v486
      %v488 = vrot.slane %v424, 1
      %v489 = vsel %vm464, %v486, %v488
      %v490 = vrot.slane %v425, 1
      %v491 = vrot.slane %v426, 1
      %v492 = vsel %vm464, %v490, %v491
      %v493 = vrot.slane %v427, 1
      %v494 = vsel %vm464, %v491, %v493
      %v495 = vrot.slane %v428, 1
      %v496 = vrot.slane %v429, 1
      %v497 = vsel %vm464, %v495, %v496
      %v498 = vrot.slane %v430, 1
      %v499 = vsel %vm464, %v496, %v498
      %v500 = vrot.slane %v431, 1
      %v501 = vrot.slane %v432, 1
      %v502 = vsel %vm464, %v500, %v501
      %v503 = vrot.slane %v433, 1
      %v504 = vsel %vm464, %v501, %v503
      %v505 = vrot.slane %v434, 1
      %v506 = vrot.slane %v435, 1
      %v507 = vsel %vm464, %v505, %v506
      %v508 = vrot.slane %v436, 1
      %v509 = vsel %vm464, %v506, %v508
      %v537 = vadd.f32 %v379, %v467
      %v538 = vadd.f32 %v380, %v469
      %v539 = vadd.f32 %v381, %v468
      %v540 = vadd.f32 %v382, %v472
      %v541 = vadd.f32 %v383, %v474
      %v542 = vadd.f32 %v384, %v473
      %v543 = vadd.f32 %v385, %v477
      %v544 = vadd.f32 %v386, %v479
      %v545 = vadd.f32 %v387, %v478
      %v546 = vadd.f32 %v388, %v482
      %v547 = vadd.f32 %v389, %v484
      %v548 = vadd.f32 %v390, %v483
      %v549 = vadd.f32 %v391, %v487
      %v550 = vadd.f32 %v392, %v489
      %v551 = vadd.f32 %v393, %v488
      %v552 = vadd.f32 %v394, %v492
      %v553 = vadd.f32 %v395, %v494
      %v554 = vadd.f32 %v396, %v493
      %v555 = vadd.f32 %v397, %v497
      %v556 = vadd.f32 %v398, %v499
      %v557 = vadd.f32 %v399, %v498
      %v558 = vadd.f32 %v400, %v502
      %v559 = vadd.f32 %v401, %v504
      %v560 = vadd.f32 %v402, %v503
      %v561 = vadd.f32 %v403, %v507
      %v562 = vadd.f32 %v404, %v509
      %v563 = vadd.f32 %v405, %v508
      %v564 = vlaneseq
      %v565 = vshrl.u32 %v564, 7
      %v566 = vsub.s32 2, %v565
      %v567 = vrot.slane %v337, %v566
      %v568 = vmul.f32 %v567, %v304
      %v569 = vmul.f32 %v567, %v305
      %v570 = vmul.f32 %v567, %v306
      %v571 = vmul.f32 %v567, %v307
      %v572 = vmul.f32 %v567, %v308
      %v573 = vmul.f32 %v567, %v309
      %v574 = vmul.f32 %v567, %v310
      %v575 = vmul.f32 %v567, %v311
      %v576 = vmul.f32 %v567, %v312
      %v577 = vmul.f32 %v567, %v313
      %v578 = vmul.f32 %v567, %v314
      %v579 = vmul.f32 %v567, %v315
      %v580 = vmul.f32 %v567, %v316
      %v581 = vmul.f32 %v567, %v317
      %v582 = vmul.f32 %v567, %v318
      %v583 = vmul.f32 %v567, %v319
      %v584 = vmul.f32 %v567, %v320
      %v585 = vmul.f32 %v567, %v321
      %v586 = vmul.f32 %v567, %v322
      %v587 = vmul.f32 %v567, %v323
      %v588 = vmul.f32 %v567, %v324
      %v589 = vmul.f32 %v567, %v325
      %v590 = vmul.f32 %v567, %v326
      %v591 = vmul.f32 %v567, %v327
      %v592 = vmul.f32 %v567, %v328
      %v593 = vmul.f32 %v567, %v329
      %v594 = vmul.f32 %v567, %v330
      %vm622 = vcmask 1045504
      %v623 = vrot.slane %v568, 2
      %v624 = vrot.slane %v569, 2
      %v625 = vsel %vm622, %v623, %v624
      %v626 = vrot.slane %v570, 2
      %v627 = vsel %vm622, %v624, %v626
      %v628 = vrot.slane %v571, 2
      %v629 = vrot.slane %v572, 2
      %v630 = vsel %vm622, %v628, %v629
      %v631 = vrot.slane %v573, 2
      %v632 = vsel %vm622, %v629, %v631
      %v633 = vrot.slane %v574, 2
      %v634 = vrot.slane %v575, 2
      %v635 = vsel %vm622, %v633, %v634
      %v636 = vrot.slane %v576, 2
      %v637 = vsel %vm622, %v634, %v636
      %v638 = vrot.slane %v577, 2
      %v639 = vrot.slane %v578, 2
      %v640 = vsel %vm622, %v638, %v639
      %v641 = vrot.slane %v579, 2
      %v642 = vsel %vm622, %v639, %v641
      %v643 = vrot.slane %v580, 2
      %v644 = vrot.slane %v581, 2
      %v645 = vsel %vm622, %v643, %v644
      %v646 = vrot.slane %v582, 2
      %v647 = vsel %vm622, %v644, %v646
      %v648 = vrot.slane %v583, 2
      %v649 = vrot.slane %v584, 2
      %v650 = vsel %vm622, %v648, %v649
      %v651 = vrot.slane %v585, 2
      %v652 = vsel %vm622, %v649, %v651
      %v653 = vrot.slane %v586, 2
      %v654 = vrot.slane %v587, 2
      %v655 = vsel %vm622, %v653, %v654
      %v656 = vrot.slane %v588, 2
      %v657 = vsel %vm622, %v654, %v656
      %v658 = vrot.slane %v589, 2
      %v659 = vrot.slane %v590, 2
      %v660 = vsel %vm622, %v658, %v659
      %v661 = vrot.slane %v591, 2
      %v662 = vsel %vm622, %v659, %v661
      %v663 = vrot.slane %v592, 2
      %v664 = vrot.slane %v593, 2
      %v665 = vsel %vm622, %v663, %v664
      %v666 = vrot.slane %v594, 2
      %v667 = vsel %vm622, %v664, %v666
      %v695 = vadd.f32 %v537, %v625
      %v696 = vadd.f32 %v538, %v627
      %v697 = vadd.f32 %v539, %v626
      %v698 = vadd.f32 %v540, %v630
      %v699 = vadd.f32 %v541, %v632
      %v700 = vadd.f32 %v542, %v631
      %v701 = vadd.f32 %v543, %v635
      %v702 = vadd.f32 %v544, %v637
      %v703 = vadd.f32 %v545, %v636
      %v704 = vadd.f32 %v546, %v640
      %v705 = vadd.f32 %v547, %v642
      %v706 = vadd.f32 %v548, %v641
      %v707 = vadd.f32 %v549, %v645
      %v708 = vadd.f32 %v550, %v647
      %v709 = vadd.f32 %v551, %v646
      %v710 = vadd.f32 %v552, %v650
      %v711 = vadd.f32 %v553, %v652
      %v712 = vadd.f32 %v554, %v651
      %v713 = vadd.f32 %v555, %v655
      %v714 = vadd.f32 %v556, %v657
      %v715 = vadd.f32 %v557, %v656
      %v716 = vadd.f32 %v558, %v660
      %v717 = vadd.f32 %v559, %v662
      %v718 = vadd.f32 %v560, %v661
      %v719 = vadd.f32 %v561, %v665
      %v720 = vadd.f32 %v562, %v667
      %v721 = vadd.f32 %v563, %v666
      %v722 = vlaneseq
      %v723 = vshrl.u32 %v722, 7
      %v724 = vsub.s32 0, %v723
      %v725 = vrot.slane %v338, %v724
      %v726 = vmul.f32 %v725, %v307
      %v727 = vmul.f32 %v725, %v308
      %v728 = vmul.f32 %v725, %v309
      %v729 = vmul.f32 %v725, %v310
      %v730 = vmul.f32 %v725, %v311
      %v731 = vmul.f32 %v725, %v312
      %v732 = vmul.f32 %v725, %v313
      %v733 = vmul.f32 %v725, %v314
      %v734 = vmul.f32 %v725, %v315
      %v735 = vmul.f32 %v725, %v316
      %v736 = vmul.f32 %v725, %v317
      %v737 = vmul.f32 %v725, %v318
      %v738 = vmul.f32 %v725, %v319
      %v739 = vmul.f32 %v725, %v320
      %v740 = vmul.f32 %v725, %v321
      %v741 = vmul.f32 %v725, %v322
      %v742 = vmul.f32 %v725, %v323
      %v743 = vmul.f32 %v725, %v324
      %v744 = vmul.f32 %v725, %v325
      %v745 = vmul.f32 %v725, %v326
      %v746 = vmul.f32 %v725, %v327
      %v747 = vmul.f32 %v725, %v328
      %v748 = vmul.f32 %v725, %v329
      %v749 = vmul.f32 %v725, %v330
      %v750 = vmul.f32 %v725, %v331
      %v751 = vmul.f32 %v725, %v332
      %v752 = vmul.f32 %v725, %v333
      %v753 = vadd.f32 %v695, %v726
      %v754 = vadd.f32 %v696, %v727
      %v755 = vadd.f32 %v697, %v728
      %v756 = vadd.f32 %v698, %v729
      %v757 = vadd.f32 %v699, %v730
      %v758 = vadd.f32 %v700, %v731
      %v759 = vadd.f32 %v701, %v732
      %v760 = vadd.f32 %v702, %v733
      %v761 = vadd.f32 %v703, %v734
      %v762 = vadd.f32 %v704, %v735
      %v763 = vadd.f32 %v705, %v736
      %v764 = vadd.f32 %v706, %v737
      %v765 = vadd.f32 %v707, %v738
      %v766 = vadd.f32 %v708, %v739
      %v767 = vadd.f32 %v709, %v740
      %v768 = vadd.f32 %v710, %v741
      %v769 = vadd.f32 %v711, %v742
      %v770 = vadd.f32 %v712, %v743
      %v771 = vadd.f32 %v713, %v744
      %v772 = vadd.f32 %v714, %v745
      %v773 = vadd.f32 %v715, %v746
      %v774 = vadd.f32 %v716, %v747
      %v775 = vadd.f32 %v717, %v748
      %v776 = vadd.f32 %v718, %v749
      %v777 = vadd.f32 %v719, %v750
      %v778 = vadd.f32 %v720, %v751
      %v779 = vadd.f32 %v721, %v752
      %v780 = vlaneseq
      %v781 = vshrl.u32 %v780, 7
      %v782 = vsub.s32 1, %v781
      %v783 = vrot.slane %v338, %v782
      %v784 = vmul.f32 %v783, %v307
      %v785 = vmul.f32 %v783, %v308
      %v786 = vmul.f32 %v783, %v309
      %v787 = vmul.f32 %v783, %v310
      %v788 = vmul.f32 %v783, %v311
      %v789 = vmul.f32 %v783, %v312
      %v790 = vmul.f32 %v783, %v313
      %v791 = vmul.f32 %v783, %v314
      %v792 = vmul.f32 %v783, %v315
      %v793 = vmul.f32 %v783, %v316
      %v794 = vmul.f32 %v783, %v317
      %v795 = vmul.f32 %v783, %v318
      %v796 = vmul.f32 %v783, %v319
      %v797 = vmul.f32 %v783, %v320
      %v798 = vmul.f32 %v783, %v321
      %v799 = vmul.f32 %v783, %v322
      %v800 = vmul.f32 %v783, %v323
      %v801 = vmul.f32 %v783, %v324
      %v802 = vmul.f32 %v783, %v325
      %v803 = vmul.f32 %v783, %v326
      %v804 = vmul.f32 %v783, %v327
      %v805 = vmul.f32 %v783, %v328
      %v806 = vmul.f32 %v783, %v329
      %v807 = vmul.f32 %v783, %v330
      %v808 = vmul.f32 %v783, %v331
      %v809 = vmul.f32 %v783, %v332
      %v810 = vmul.f32 %v783, %v333
      %v838 = vrot.slane %v784, 1
      %v839 = vrot.slane %v785, 1
      %v840 = vsel %vm464, %v838, %v839
      %v841 = vrot.slane %v786, 1
      %v842 = vsel %vm464, %v839, %v841
      %v843 = vrot.slane %v787, 1
      %v844 = vrot.slane %v788, 1
      %v845 = vsel %vm464, %v843, %v844
      %v846 = vrot.slane %v789, 1
      %v847 = vsel %vm464, %v844, %v846
      %v848 = vrot.slane %v790, 1
      %v849 = vrot.slane %v791, 1
      %v850 = vsel %vm464, %v848, %v849
      %v851 = vrot.slane %v792, 1
      %v852 = vsel %vm464, %v849, %v851
      %v853 = vrot.slane %v793, 1
      %v854 = vrot.slane %v794, 1
      %v855 = vsel %vm464, %v853, %v854
      %v856 = vrot.slane %v795, 1
      %v857 = vsel %vm464, %v854, %v856
      %v858 = vrot.slane %v796, 1
      %v859 = vrot.slane %v797, 1
      %v860 = vsel %vm464, %v858, %v859
      %v861 = vrot.slane %v798, 1
      %v862 = vsel %vm464, %v859, %v861
      %v863 = vrot.slane %v799, 1
      %v864 = vrot.slane %v800, 1
      %v865 = vsel %vm464, %v863, %v864
      %v866 = vrot.slane %v801, 1
      %v867 = vsel %vm464, %v864, %v866
      %v868 = vrot.slane %v802, 1
      %v869 = vrot.slane %v803, 1
      %v870 = vsel %vm464, %v868, %v869
      %v871 = vrot.slane %v804, 1
      %v872 = vsel %vm464, %v869, %v871
      %v873 = vrot.slane %v805, 1
      %v874 = vrot.slane %v806, 1
      %v875 = vsel %vm464, %v873, %v874
      %v876 = vrot.slane %v807, 1
      %v877 = vsel %vm464, %v874, %v876
      %v878 = vrot.slane %v808, 1
      %v879 = vrot.slane %v809, 1
      %v880 = vsel %vm464, %v878, %v879
      %v881 = vrot.slane %v810, 1
      %v882 = vsel %vm464, %v879, %v881
      %v910 = vadd.f32 %v753, %v840
      %v911 = vadd.f32 %v754, %v842
      %v912 = vadd.f32 %v755, %v841
      %v913 = vadd.f32 %v756, %v845
      %v914 = vadd.f32 %v757, %v847
      %v915 = vadd.f32 %v758, %v846
      %v916 = vadd.f32 %v759, %v850
      %v917 = vadd.f32 %v760, %v852
      %v918 = vadd.f32 %v761, %v851
      %v919 = vadd.f32 %v762, %v855
      %v920 = vadd.f32 %v763, %v857
      %v921 = vadd.f32 %v764, %v856
      %v922 = vadd.f32 %v765, %v860
      %v923 = vadd.f32 %v766, %v862
      %v924 = vadd.f32 %v767, %v861
      %v925 = vadd.f32 %v768, %v865
      %v926 = vadd.f32 %v769, %v867
      %v927 = vadd.f32 %v770, %v866
      %v928 = vadd.f32 %v771, %v870
      %v929 = vadd.f32 %v772, %v872
      %v930 = vadd.f32 %v773, %v871
      %v931 = vadd.f32 %v774, %v875
      %v932 = vadd.f32 %v775, %v877
      %v933 = vadd.f32 %v776, %v876
      %v934 = vadd.f32 %v777, %v880
      %v935 = vadd.f32 %v778, %v882
      %v936 = vadd.f32 %v779, %v881
      %v937 = vlaneseq
      %v938 = vshrl.u32 %v937, 7
      %v939 = vsub.s32 2, %v938
      %v940 = vrot.slane %v338, %v939
      %v941 = vmul.f32 %v940, %v307
      %v942 = vmul.f32 %v940, %v308
      %v943 = vmul.f32 %v940, %v309
      %v944 = vmul.f32 %v940, %v310
      %v945 = vmul.f32 %v940, %v311
      %v946 = vmul.f32 %v940, %v312
      %v947 = vmul.f32 %v940, %v313
      %v948 = vmul.f32 %v940, %v314
      %v949 = vmul.f32 %v940, %v315
      %v950 = vmul.f32 %v940, %v316
      %v951 = vmul.f32 %v940, %v317
      %v952 = vmul.f32 %v940, %v318
      %v953 = vmul.f32 %v940, %v319
      %v954 = vmul.f32 %v940, %v320
      %v955 = vmul.f32 %v940, %v321
      %v956 = vmul.f32 %v940, %v322
      %v957 = vmul.f32 %v940, %v323
      %v958 = vmul.f32 %v940, %v324
      %v959 = vmul.f32 %v940, %v325
      %v960 = vmul.f32 %v940, %v326
      %v961 = vmul.f32 %v940, %v327
      %v962 = vmul.f32 %v940, %v328
      %v963 = vmul.f32 %v940, %v329
      %v964 = vmul.f32 %v940, %v330
      %v965 = vmul.f32 %v940, %v331
      %v966 = vmul.f32 %v940, %v332
      %v967 = vmul.f32 %v940, %v333
      %v995 = vrot.slane %v941, 2
      %v996 = vrot.slane %v942, 2
      %v997 = vsel %vm622, %v995, %v996
      %v998 = vrot.slane %v943, 2
      %v999 = vsel %vm622, %v996, %v998
      %v1000 = vrot.slane %v944, 2
      %v1001 = vrot.slane %v945, 2
      %v1002 = vsel %vm622, %v1000, %v1001
      %v1003 = vrot.slane %v946, 2
      %v1004 = vsel %vm622, %v1001, %v1003
      %v1005 = vrot.slane %v947, 2
      %v1006 = vrot.slane %v948, 2
      %v1007 = vsel %vm622, %v1005, %v1006
      %v1008 = vrot.slane %v949, 2
      %v1009 = vsel %vm622, %v1006, %v1008
      %v1010 = vrot.slane %v950, 2
      %v1011 = vrot.slane %v951, 2
      %v1012 = vsel %vm622, %v1010, %v1011
      %v1013 = vrot.slane %v952, 2
      %v1014 = vsel %vm622, %v1011, %v1013
      %v1015 = vrot.slane %v953, 2
      %v1016 = vrot.slane %v954, 2
      %v1017 = vsel %vm622, %v1015, %v1016
      %v1018 = vrot.slane %v955, 2
      %v1019 = vsel %vm622, %v1016, %v1018
      %v1020 = vrot.slane %v956, 2
      %v1021 = vrot.slane %v957, 2
      %v1022 = vsel %vm622, %v1020, %v1021
      %v1023 = vrot.slane %v958, 2
      %v1024 = vsel %vm622, %v1021, %v1023
      %v1025 = vrot.slane %v959, 2
      %v1026 = vrot.slane %v960, 2
      %v1027 = vsel %vm622, %v1025, %v1026
      %v1028 = vrot.slane %v961, 2
      %v1029 = vsel %vm622, %v1026, %v1028
      %v1030 = vrot.slane %v962, 2
      %v1031 = vrot.slane %v963, 2
      %v1032 = vsel %vm622, %v1030, %v1031
      %v1033 = vrot.slane %v964, 2
      %v1034 = vsel %vm622, %v1031, %v1033
      %v1035 = vrot.slane %v965, 2
      %v1036 = vrot.slane %v966, 2
      %v1037 = vsel %vm622, %v1035, %v1036
      %v1038 = vrot.slane %v967, 2
      %v1039 = vsel %vm622, %v1036, %v1038
      %v1067 = vadd.f32 %v910, %v997
      %v1068 = vadd.f32 %v911, %v999
      %v1069 = vadd.f32 %v912, %v998
      %v1070 = vadd.f32 %v913, %v1002
      %v1071 = vadd.f32 %v914, %v1004
      %v1072 = vadd.f32 %v915, %v1003
      %v1073 = vadd.f32 %v916, %v1007
      %v1074 = vadd.f32 %v917, %v1009
      %v1075 = vadd.f32 %v918, %v1008
      %v1076 = vadd.f32 %v919, %v1012
      %v1077 = vadd.f32 %v920, %v1014
      %v1078 = vadd.f32 %v921, %v1013
      %v1079 = vadd.f32 %v922, %v1017
      %v1080 = vadd.f32 %v923, %v1019
      %v1081 = vadd.f32 %v924, %v1018
      %v1082 = vadd.f32 %v925, %v1022
      %v1083 = vadd.f32 %v926, %v1024
      %v1084 = vadd.f32 %v927, %v1023
      %v1085 = vadd.f32 %v928, %v1027
      %v1086 = vadd.f32 %v929, %v1029
      %v1087 = vadd.f32 %v930, %v1028
      %v1088 = vadd.f32 %v931, %v1032
      %v1089 = vadd.f32 %v932, %v1034
      %v1090 = vadd.f32 %v933, %v1033
      %v1091 = vadd.f32 %v934, %v1037
      %v1092 = vadd.f32 %v935, %v1039
      %v1093 = vadd.f32 %v936, %v1038
      %v1094 = vlaneseq
      %v1095 = vshrl.u32 %v1094, 7
      %v1096 = vsub.s32 0, %v1095
      %v1097 = vrot.slane %v339, %v1096
      %v1098 = vmul.f32 %v1097, %v310
      %v1099 = vmul.f32 %v1097, %v311
      %v1100 = vmul.f32 %v1097, %v312
      %v1101 = vmul.f32 %v1097, %v313
      %v1102 = vmul.f32 %v1097, %v314
      %v1103 = vmul.f32 %v1097, %v315
      %v1104 = vmul.f32 %v1097, %v316
      %v1105 = vmul.f32 %v1097, %v317
      %v1106 = vmul.f32 %v1097, %v318
      %v1107 = vmul.f32 %v1097, %v319
      %v1108 = vmul.f32 %v1097, %v320
      %v1109 = vmul.f32 %v1097, %v321
      %v1110 = vmul.f32 %v1097, %v322
      %v1111 = vmul.f32 %v1097, %v323
      %v1112 = vmul.f32 %v1097, %v324
      %v1113 = vmul.f32 %v1097, %v325
      %v1114 = vmul.f32 %v1097, %v326
      %v1115 = vmul.f32 %v1097, %v327
      %v1116 = vmul.f32 %v1097, %v328
      %v1117 = vmul.f32 %v1097, %v329
      %v1118 = vmul.f32 %v1097, %v330
      %v1119 = vmul.f32 %v1097, %v331
      %v1120 = vmul.f32 %v1097, %v332
      %v1121 = vmul.f32 %v1097, %v333
      %v1122 = vmul.f32 %v1097, %v334
      %v1123 = vmul.f32 %v1097, %v335
      %v1124 = vmul.f32 %v1097, %v336
      %v1125 = vadd.f32 %v1067, %v1098
      %v1126 = vadd.f32 %v1068, %v1099
      %v1127 = vadd.f32 %v1069, %v1100
      %v1128 = vadd.f32 %v1070, %v1101
      %v1129 = vadd.f32 %v1071, %v1102
      %v1130 = vadd.f32 %v1072, %v1103
      %v1131 = vadd.f32 %v1073, %v1104
      %v1132 = vadd.f32 %v1074, %v1105
      %v1133 = vadd.f32 %v1075, %v1106
      %v1134 = vadd.f32 %v1076, %v1107
      %v1135 = vadd.f32 %v1077, %v1108
      %v1136 = vadd.f32 %v1078, %v1109
      %v1137 = vadd.f32 %v1079, %v1110
      %v1138 = vadd.f32 %v1080, %v1111
      %v1139 = vadd.f32 %v1081, %v1112
      %v1140 = vadd.f32 %v1082, %v1113
      %v1141 = vadd.f32 %v1083, %v1114
      %v1142 = vadd.f32 %v1084, %v1115
      %v1143 = vadd.f32 %v1085, %v1116
      %v1144 = vadd.f32 %v1086, %v1117
      %v1145 = vadd.f32 %v1087, %v1118
      %v1146 = vadd.f32 %v1088, %v1119
      %v1147 = vadd.f32 %v1089, %v1120
      %v1148 = vadd.f32 %v1090, %v1121
      %v1149 = vadd.f32 %v1091, %v1122
      %v1150 = vadd.f32 %v1092, %v1123
      %v1151 = vadd.f32 %v1093, %v1124
      %v1152 = vlaneseq
      %v1153 = vshrl.u32 %v1152, 7
      %v1154 = vsub.s32 1, %v1153
      %v1155 = vrot.slane %v339, %v1154
      %v1156 = vmul.f32 %v1155, %v310
      %v1157 = vmul.f32 %v1155, %v311
      %v1158 = vmul.f32 %v1155, %v312
      %v1159 = vmul.f32 %v1155, %v313
      %v1160 = vmul.f32 %v1155, %v314
      %v1161 = vmul.f32 %v1155, %v315
      %v1162 = vmul.f32 %v1155, %v316
      %v1163 = vmul.f32 %v1155, %v317
      %v1164 = vmul.f32 %v1155, %v318
      %v1165 = vmul.f32 %v1155, %v319
      %v1166 = vmul.f32 %v1155, %v320
      %v1167 = vmul.f32 %v1155, %v321
      %v1168 = vmul.f32 %v1155, %v322
      %v1169 = vmul.f32 %v1155, %v323
      %v1170 = vmul.f32 %v1155, %v324
      %v1171 = vmul.f32 %v1155, %v325
      %v1172 = vmul.f32 %v1155, %v326
      %v1173 = vmul.f32 %v1155, %v327
      %v1174 = vmul.f32 %v1155, %v328
      %v1175 = vmul.f32 %v1155, %v329
      %v1176 = vmul.f32 %v1155, %v330
      %v1177 = vmul.f32 %v1155, %v331
      %v1178 = vmul.f32 %v1155, %v332
      %v1179 = vmul.f32 %v1155, %v333
      %v1180 = vmul.f32 %v1155, %v334
      %v1181 = vmul.f32 %v1155, %v335
      %v1182 = vmul.f32 %v1155, %v336
      %v1210 = vrot.slane %v1156, 1
      %v1211 = vrot.slane %v1157, 1
      %v1212 = vsel %vm464, %v1210, %v1211
      %v1213 = vrot.slane %v1158, 1
      %v1214 = vsel %vm464, %v1211, %v1213
      %v1215 = vrot.slane %v1159, 1
      %v1216 = vrot.slane %v1160, 1
      %v1217 = vsel %vm464, %v1215, %v1216
      %v1218 = vrot.slane %v1161, 1
      %v1219 = vsel %vm464, %v1216, %v1218
      %v1220 = vrot.slane %v1162, 1
      %v1221 = vrot.slane %v1163, 1
      %v1222 = vsel %vm464, %v1220, %v1221
      %v1223 = vrot.slane %v1164, 1
      %v1224 = vsel %vm464, %v1221, %v1223
      %v1225 = vrot.slane %v1165, 1
      %v1226 = vrot.slane %v1166, 1
      %v1227 = vsel %vm464, %v1225, %v1226
      %v1228 = vrot.slane %v1167, 1
      %v1229 = vsel %vm464, %v1226, %v1228
      %v1230 = vrot.slane %v1168, 1
      %v1231 = vrot.slane %v1169, 1
      %v1232 = vsel %vm464, %v1230, %v1231
      %v1233 = vrot.slane %v1170, 1
      %v1234 = vsel %vm464, %v1231, %v1233
      %v1235 = vrot.slane %v1171, 1
      %v1236 = vrot.slane %v1172, 1
      %v1237 = vsel %vm464, %v1235, %v1236
      %v1238 = vrot.slane %v1173, 1
      %v1239 = vsel %vm464, %v1236, %v1238
      %v1240 = vrot.slane %v1174, 1
      %v1241 = vrot.slane %v1175, 1
      %v1242 = vsel %vm464, %v1240, %v1241
      %v1243 = vrot.slane %v1176, 1
      %v1244 = vsel %vm464, %v1241, %v1243
      %v1245 = vrot.slane %v1177, 1
      %v1246 = vrot.slane %v1178, 1
      %v1247 = vsel %vm464, %v1245, %v1246
      %v1248 = vrot.slane %v1179, 1
      %v1249 = vsel %vm464, %v1246, %v1248
      %v1250 = vrot.slane %v1180, 1
      %v1251 = vrot.slane %v1181, 1
      %v1252 = vsel %vm464, %v1250, %v1251
      %v1253 = vrot.slane %v1182, 1
      %v1254 = vsel %vm464, %v1251, %v1253
      %v1282 = vadd.f32 %v1125, %v1212
      %v1283 = vadd.f32 %v1126, %v1214
      %v1284 = vadd.f32 %v1127, %v1213
      %v1285 = vadd.f32 %v1128, %v1217
      %v1286 = vadd.f32 %v1129, %v1219
      %v1287 = vadd.f32 %v1130, %v1218
      %v1288 = vadd.f32 %v1131, %v1222
      %v1289 = vadd.f32 %v1132, %v1224
      %v1290 = vadd.f32 %v1133, %v1223
      %v1291 = vadd.f32 %v1134, %v1227
      %v1292 = vadd.f32 %v1135, %v1229
      %v1293 = vadd.f32 %v1136, %v1228
      %v1294 = vadd.f32 %v1137, %v1232
      %v1295 = vadd.f32 %v1138, %v1234
      %v1296 = vadd.f32 %v1139, %v1233
      %v1297 = vadd.f32 %v1140, %v1237
      %v1298 = vadd.f32 %v1141, %v1239
      %v1299 = vadd.f32 %v1142, %v1238
      %v1300 = vadd.f32 %v1143, %v1242
      %v1301 = vadd.f32 %v1144, %v1244
      %v1302 = vadd.f32 %v1145, %v1243
      %v1303 = vadd.f32 %v1146, %v1247
      %v1304 = vadd.f32 %v1147, %v1249
      %v1305 = vadd.f32 %v1148, %v1248
      %v1306 = vadd.f32 %v1149, %v1252
      %v1307 = vadd.f32 %v1150, %v1254
      %v1308 = vadd.f32 %v1151, %v1253
      %v1309 = vlaneseq
      %v1310 = vshrl.u32 %v1309, 7
      %v1311 = vsub.s32 2, %v1310
      %v1312 = vrot.slane %v339, %v1311
      %v1313 = vmul.f32 %v1312, %v310
      %v1314 = vmul.f32 %v1312, %v311
      %v1315 = vmul.f32 %v1312, %v312
      %v1316 = vmul.f32 %v1312, %v313
      %v1317 = vmul.f32 %v1312, %v314
      %v1318 = vmul.f32 %v1312, %v315
      %v1319 = vmul.f32 %v1312, %v316
      %v1320 = vmul.f32 %v1312, %v317
      %v1321 = vmul.f32 %v1312, %v318
      %v1322 = vmul.f32 %v1312, %v319
      %v1323 = vmul.f32 %v1312, %v320
      %v1324 = vmul.f32 %v1312, %v321
      %v1325 = vmul.f32 %v1312, %v322
      %v1326 = vmul.f32 %v1312, %v323
      %v1327 = vmul.f32 %v1312, %v324
      %v1328 = vmul.f32 %v1312, %v325
      %v1329 = vmul.f32 %v1312, %v326
      %v1330 = vmul.f32 %v1312, %v327
      %v1331 = vmul.f32 %v1312, %v328
      %v1332 = vmul.f32 %v1312, %v329
      %v1333 = vmul.f32 %v1312, %v330
      %v1334 = vmul.f32 %v1312, %v331
      %v1335 = vmul.f32 %v1312, %v332
      %v1336 = vmul.f32 %v1312, %v333
      %v1337 = vmul.f32 %v1312, %v334
      %v1338 = vmul.f32 %v1312, %v335
      %v1339 = vmul.f32 %v1312, %v336
      %v1367 = vrot.slane %v1313, 2
      %v1368 = vrot.slane %v1314, 2
      %v1369 = vsel %vm622, %v1367, %v1368
      %v1370 = vrot.slane %v1315, 2
      %v1371 = vsel %vm622, %v1368, %v1370
      %v1372 = vrot.slane %v1316, 2
      %v1373 = vrot.slane %v1317, 2
      %v1374 = vsel %vm622, %v1372, %v1373
      %v1375 = vrot.slane %v1318, 2
      %v1376 = vsel %vm622, %v1373, %v1375
      %v1377 = vrot.slane %v1319, 2
      %v1378 = vrot.slane %v1320, 2
      %v1379 = vsel %vm622, %v1377, %v1378
      %v1380 = vrot.slane %v1321, 2
      %v1381 = vsel %vm622, %v1378, %v1380
      %v1382 = vrot.slane %v1322, 2
      %v1383 = vrot.slane %v1323, 2
      %v1384 = vsel %vm622, %v1382, %v1383
      %v1385 = vrot.slane %v1324, 2
      %v1386 = vsel %vm622, %v1383, %v1385
      %v1387 = vrot.slane %v1325, 2
      %v1388 = vrot.slane %v1326, 2
      %v1389 = vsel %vm622, %v1387, %v1388
      %v1390 = vrot.slane %v1327, 2
      %v1391 = vsel %vm622, %v1388, %v1390
      %v1392 = vrot.slane %v1328, 2
      %v1393 = vrot.slane %v1329, 2
      %v1394 = vsel %vm622, %v1392, %v1393
      %v1395 = vrot.slane %v1330, 2
      %v1396 = vsel %vm622, %v1393, %v1395
      %v1397 = vrot.slane %v1331, 2
      %v1398 = vrot.slane %v1332, 2
      %v1399 = vsel %vm622, %v1397, %v1398
      %v1400 = vrot.slane %v1333, 2
      %v1401 = vsel %vm622, %v1398, %v1400
      %v1402 = vrot.slane %v1334, 2
      %v1403 = vrot.slane %v1335, 2
      %v1404 = vsel %vm622, %v1402, %v1403
      %v1405 = vrot.slane %v1336, 2
      %v1406 = vsel %vm622, %v1403, %v1405
      %v1407 = vrot.slane %v1337, 2
      %v1408 = vrot.slane %v1338, 2
      %v1409 = vsel %vm622, %v1407, %v1408
      %v1410 = vrot.slane %v1339, 2
      %v1411 = vsel %vm622, %v1408, %v1410
      %v1439 = vadd.f32 %v1282, %v1369
      %v1440 = vadd.f32 %v1283, %v1371
      %v1441 = vadd.f32 %v1284, %v1370
      %v1442 = vadd.f32 %v1285, %v1374
      %v1443 = vadd.f32 %v1286, %v1376
      %v1444 = vadd.f32 %v1287, %v1375
      %v1445 = vadd.f32 %v1288, %v1379
      %v1446 = vadd.f32 %v1289, %v1381
      %v1447 = vadd.f32 %v1290, %v1380
      %v1448 = vadd.f32 %v1291, %v1384
      %v1449 = vadd.f32 %v1292, %v1386
      %v1450 = vadd.f32 %v1293, %v1385
      %v1451 = vadd.f32 %v1294, %v1389
      %v1452 = vadd.f32 %v1295, %v1391
      %v1453 = vadd.f32 %v1296, %v1390
      %v1454 = vadd.f32 %v1297, %v1394
      %v1455 = vadd.f32 %v1298, %v1396
      %v1456 = vadd.f32 %v1299, %v1395
      %v1457 = vadd.f32 %v1300, %v1399
      %v1458 = vadd.f32 %v1301, %v1401
      %v1459 = vadd.f32 %v1302, %v1400
      %v1460 = vadd.f32 %v1303, %v1404
      %v1461 = vadd.f32 %v1304, %v1406
      %v1462 = vadd.f32 %v1305, %v1405
      %v1463 = vadd.f32 %v1306, %v1409
      %v1464 = vadd.f32 %v1307, %v1411
      %v1465 = vadd.f32 %v1308, %v1410
      %v1466 = vxor.u32 %v1439, 2147483648
      %v1467 = vxor.u32 %v1440, 2147483648
      %v1468 = vxor.u32 %v1441, 2147483648
      %v1469 = vxor.u32 %v1442, 2147483648
      %v1470 = vxor.u32 %v1443, 2147483648
      %v1471 = vxor.u32 %v1444, 2147483648
      %v1472 = vxor.u32 %v1445, 2147483648
      %v1473 = vxor.u32 %v1446, 2147483648
      %v1474 = vxor.u32 %v1447, 2147483648
      %v1475 = vxor.u32 %v1448, 2147483648
      %v1476 = vxor.u32 %v1449, 2147483648
      %v1477 = vxor.u32 %v1450, 2147483648
      %v1478 = vxor.u32 %v1451, 2147483648
      %v1479 = vxor.u32 %v1452, 2147483648
      %v1480 = vxor.u32 %v1453, 2147483648
      %v1481 = vxor.u32 %v1454, 2147483648
      %v1482 = vxor.u32 %v1455, 2147483648
      %v1483 = vxor.u32 %v1456, 2147483648
      %v1484 = vxor.u32 %v1457, 2147483648
      %v1485 = vxor.u32 %v1458, 2147483648
      %v1486 = vxor.u32 %v1459, 2147483648
      %v1487 = vxor.u32 %v1460, 2147483648
      %v1488 = vxor.u32 %v1461, 2147483648
      %v1489 = vxor.u32 %v1462, 2147483648
      %v1490 = vxor.u32 %v1463, 2147483648
      %v1491 = vxor.u32 %v1464, 2147483648
      %v1492 = vxor.u32 %v1465, 2147483648
      %v1493 = vmul.f32 %v1466, 1.442695
      %v1494 = vpow.pop %v1493
      %v1495 = vmul.f32 %v1467, 1.442695
      %v1496 = vpow.pop %v1495
      %v1497 = vmul.f32 %v1468, 1.442695
      %v1498 = vpow.pop %v1497
      %v1499 = vmul.f32 %v1469, 1.442695
      %v1500 = vpow.pop %v1499
      %v1501 = vmul.f32 %v1470, 1.442695
      %v1502 = vpow.pop %v1501
      %v1503 = vmul.f32 %v1471, 1.442695
      %v1504 = vpow.pop %v1503
      %v1505 = vmul.f32 %v1472, 1.442695
      %v1506 = vpow.pop %v1505
      %v1507 = vmul.f32 %v1473, 1.442695
      %v1508 = vpow.pop %v1507
      %v1509 = vmul.f32 %v1474, 1.442695
      %v1510 = vpow.pop %v1509
      %v1511 = vmul.f32 %v1475, 1.442695
      %v1512 = vpow.pop %v1511
      %v1513 = vmul.f32 %v1476, 1.442695
      %v1514 = vpow.pop %v1513
      %v1515 = vmul.f32 %v1477, 1.442695
      %v1516 = vpow.pop %v1515
      %v1517 = vmul.f32 %v1478, 1.442695
      %v1518 = vpow.pop %v1517
      %v1519 = vmul.f32 %v1479, 1.442695
      %v1520 = vpow.pop %v1519
      %v1521 = vmul.f32 %v1480, 1.442695
      %v1522 = vpow.pop %v1521
      %v1523 = vmul.f32 %v1481, 1.442695
      %v1524 = vpow.pop %v1523
      %v1525 = vmul.f32 %v1482, 1.442695
      %v1526 = vpow.pop %v1525
      %v1527 = vmul.f32 %v1483, 1.442695
      %v1528 = vpow.pop %v1527
      %v1529 = vmul.f32 %v1484, 1.442695
      %v1530 = vpow.pop %v1529
      %v1531 = vmul.f32 %v1485, 1.442695
      %v1532 = vpow.pop %v1531
      %v1533 = vmul.f32 %v1486, 1.442695
      %v1534 = vpow.pop %v1533
      %v1535 = vmul.f32 %v1487, 1.442695
      %v1536 = vpow.pop %v1535
      %v1537 = vmul.f32 %v1488, 1.442695
      %v1538 = vpow.pop %v1537
      %v1539 = vmul.f32 %v1489, 1.442695
      %v1540 = vpow.pop %v1539
      %v1541 = vmul.f32 %v1490, 1.442695
      %v1542 = vpow.pop %v1541
      %v1543 = vmul.f32 %v1491, 1.442695
      %v1544 = vpow.pop %v1543
      %v1545 = vmul.f32 %v1492, 1.442695
      %v1546 = vpow.pop %v1545
      %v1547 = vadd.f32 %v1494, 1.0
      %v1548 = vadd.f32 %v1496, 1.0
      %v1549 = vadd.f32 %v1498, 1.0
      %v1550 = vadd.f32 %v1500, 1.0
      %v1551 = vadd.f32 %v1502, 1.0
      %v1552 = vadd.f32 %v1504, 1.0
      %v1553 = vadd.f32 %v1506, 1.0
      %v1554 = vadd.f32 %v1508, 1.0
      %v1555 = vadd.f32 %v1510, 1.0
      %v1556 = vadd.f32 %v1512, 1.0
      %v1557 = vadd.f32 %v1514, 1.0
      %v1558 = vadd.f32 %v1516, 1.0
      %v1559 = vadd.f32 %v1518, 1.0
      %v1560 = vadd.f32 %v1520, 1.0
      %v1561 = vadd.f32 %v1522, 1.0
      %v1562 = vadd.f32 %v1524, 1.0
      %v1563 = vadd.f32 %v1526, 1.0
      %v1564 = vadd.f32 %v1528, 1.0
      %v1565 = vadd.f32 %v1530, 1.0
      %v1566 = vadd.f32 %v1532, 1.0
      %v1567 = vadd.f32 %v1534, 1.0
      %v1568 = vadd.f32 %v1536, 1.0
      %v1569 = vadd.f32 %v1538, 1.0
      %v1570 = vadd.f32 %v1540, 1.0
      %v1571 = vadd.f32 %v1542, 1.0
      %v1572 = vadd.f32 %v1544, 1.0
      %v1573 = vadd.f32 %v1546, 1.0
      %v1574 = vrcp.pop %v1547
      %v1575 = vmul.f32 1.0, %v1574
      %v1576 = vrcp.pop %v1548
      %v1577 = vmul.f32 1.0, %v1576
      %v1578 = vrcp.pop %v1549
      %v1579 = vmul.f32 1.0, %v1578
      %v1580 = vrcp.pop %v1550
      %v1581 = vmul.f32 1.0, %v1580
      %v1582 = vrcp.pop %v1551
      %v1583 = vmul.f32 1.0, %v1582
      %v1584 = vrcp.pop %v1552
      %v1585 = vmul.f32 1.0, %v1584
      %v1586 = vrcp.pop %v1553
      %v1587 = vmul.f32 1.0, %v1586
      %v1588 = vrcp.pop %v1554
      %v1589 = vmul.f32 1.0, %v1588
      %v1590 = vrcp.pop %v1555
      %v1591 = vmul.f32 1.0, %v1590
      %v1592 = vrcp.pop %v1556
      %v1593 = vmul.f32 1.0, %v1592
      %v1594 = vrcp.pop %v1557
      %v1595 = vmul.f32 1.0, %v1594
      %v1596 = vrcp.pop %v1558
      %v1597 = vmul.f32 1.0, %v1596
      %v1598 = vrcp.pop %v1559
      %v1599 = vmul.f32 1.0, %v1598
      %v1600 = vrcp.pop %v1560
      %v1601 = vmul.f32 1.0, %v1600
      %v1602 = vrcp.pop %v1561
      %v1603 = vmul.f32 1.0, %v1602
      %v1604 = vrcp.pop %v1562
      %v1605 = vmul.f32 1.0, %v1604
      %v1606 = vrcp.pop %v1563
      %v1607 = vmul.f32 1.0, %v1606
      %v1608 = vrcp.pop %v1564
      %v1609 = vmul.f32 1.0, %v1608
      %v1610 = vrcp.pop %v1565
      %v1611 = vmul.f32 1.0, %v1610
      %v1612 = vrcp.pop %v1566
      %v1613 = vmul.f32 1.0, %v1612
      %v1614 = vrcp.pop %v1567
      %v1615 = vmul.f32 1.0, %v1614
      %v1616 = vrcp.pop %v1568
      %v1617 = vmul.f32 1.0, %v1616
      %v1618 = vrcp.pop %v1569
      %v1619 = vmul.f32 1.0, %v1618
      %v1620 = vrcp.pop %v1570
      %v1621 = vmul.f32 1.0, %v1620
      %v1622 = vrcp.pop %v1571
      %v1623 = vmul.f32 1.0, %v1622
      %v1624 = vrcp.pop %v1572
      %v1625 = vmul.f32 1.0, %v1624
      %v1626 = vrcp.pop %v1573
      %v1627 = vmul.f32 1.0, %v1626
      %vm1628 = vcmask 785408
      %1629 = vst.msk [vmem:[%s277] sm:$0xff] %vm1628, %v1439
      %1630 = vst.msk [vmem:[%s277 + $0x8] sm:$0xff] %vm1628, %v1440
      %vm1631 = vcmask 779264
      %1632 = vst.msk [vmem:[%s277 + $0x10] sm:$0x3] %vm1631, %v1441
      %1633 = vst.msk [vmem:[%s277 + $0x18] sm:$0xff] %vm1628, %v1442
      %1634 = vst.msk [vmem:[%s277 + $0x20] sm:$0xff] %vm1628, %v1443
      %1635 = vst.msk [vmem:[%s277 + $0x28] sm:$0x3] %vm1631, %v1444
      %1636 = vst.msk [vmem:[%s277 + $0x30] sm:$0xff] %vm1628, %v1445
      %1637 = vst.msk [vmem:[%s277 + $0x38] sm:$0xff] %vm1628, %v1446
      %1638 = vst.msk [vmem:[%s277 + $0x40] sm:$0x3] %vm1631, %v1447
      %1639 = vst.msk [vmem:[%s277 + $0x48] sm:$0xff] %vm1628, %v1448
      %1640 = vst.msk [vmem:[%s277 + $0x50] sm:$0xff] %vm1628, %v1449
      %1641 = vst.msk [vmem:[%s277 + $0x58] sm:$0x3] %vm1631, %v1450
      %1642 = vst.msk [vmem:[%s277 + $0x60] sm:$0xff] %vm1628, %v1451
      %1643 = vst.msk [vmem:[%s277 + $0x68] sm:$0xff] %vm1628, %v1452
      %1644 = vst.msk [vmem:[%s277 + $0x70] sm:$0x3] %vm1631, %v1453
      %1645 = vst.msk [vmem:[%s277 + $0x78] sm:$0xff] %vm1628, %v1454
      %1646 = vst.msk [vmem:[%s277 + $0x80] sm:$0xff] %vm1628, %v1455
      %1647 = vst.msk [vmem:[%s277 + $0x88] sm:$0x3] %vm1631, %v1456
      %1648 = vst.msk [vmem:[%s277 + $0x90] sm:$0xff] %vm1628, %v1457
      %1649 = vst.msk [vmem:[%s277 + $0x98] sm:$0xff] %vm1628, %v1458
      %1650 = vst.msk [vmem:[%s277 + $0xa0] sm:$0x3] %vm1631, %v1459
      %1651 = vst.msk [vmem:[%s277 + $0xa8] sm:$0xff] %vm1628, %v1460
      %1652 = vst.msk [vmem:[%s277 + $0xb0] sm:$0xff] %vm1628, %v1461
      %1653 = vst.msk [vmem:[%s277 + $0xb8] sm:$0x3] %vm1631, %v1462
      %1654 = vst.msk [vmem:[%s277 + $0xc0] sm:$0xff] %vm1628, %v1463
      %1655 = vst.msk [vmem:[%s277 + $0xc8] sm:$0xff] %vm1628, %v1464
      %1656 = vst.msk [vmem:[%s277 + $0xd0] sm:$0x3] %vm1631, %v1465
      %1657 = vst.msk [vmem:[%s288] sm:$0xff] %vm1628, %v1575
      %1658 = vst.msk [vmem:[%s288 + $0x8] sm:$0xff] %vm1628, %v1577
      %1659 = vst.msk [vmem:[%s288 + $0x10] sm:$0x3] %vm1631, %v1579
      %1660 = vst.msk [vmem:[%s288 + $0x18] sm:$0xff] %vm1628, %v1581
      %1661 = vst.msk [vmem:[%s288 + $0x20] sm:$0xff] %vm1628, %v1583
      %1662 = vst.msk [vmem:[%s288 + $0x28] sm:$0x3] %vm1631, %v1585
      %1663 = vst.msk [vmem:[%s288 + $0x30] sm:$0xff] %vm1628, %v1587
      %1664 = vst.msk [vmem:[%s288 + $0x38] sm:$0xff] %vm1628, %v1589
      %1665 = vst.msk [vmem:[%s288 + $0x40] sm:$0x3] %vm1631, %v1591
      %1666 = vst.msk [vmem:[%s288 + $0x48] sm:$0xff] %vm1628, %v1593
      %1667 = vst.msk [vmem:[%s288 + $0x50] sm:$0xff] %vm1628, %v1595
      %1668 = vst.msk [vmem:[%s288 + $0x58] sm:$0x3] %vm1631, %v1597
      %1669 = vst.msk [vmem:[%s288 + $0x60] sm:$0xff] %vm1628, %v1599
      %1670 = vst.msk [vmem:[%s288 + $0x68] sm:$0xff] %vm1628, %v1601
      %1671 = vst.msk [vmem:[%s288 + $0x70] sm:$0x3] %vm1631, %v1603
      %1672 = vst.msk [vmem:[%s288 + $0x78] sm:$0xff] %vm1628, %v1605
      %1673 = vst.msk [vmem:[%s288 + $0x80] sm:$0xff] %vm1628, %v1607
      %1674 = vst.msk [vmem:[%s288 + $0x88] sm:$0x3] %vm1631, %v1609
      %1675 = vst.msk [vmem:[%s288 + $0x90] sm:$0xff] %vm1628, %v1611
      %1676 = vst.msk [vmem:[%s288 + $0x98] sm:$0xff] %vm1628, %v1613
      %1677 = vst.msk [vmem:[%s288 + $0xa0] sm:$0x3] %vm1631, %v1615
      %1678 = vst.msk [vmem:[%s288 + $0xa8] sm:$0xff] %vm1628, %v1617
      %1679 = vst.msk [vmem:[%s288 + $0xb0] sm:$0xff] %vm1628, %v1619
      %1680 = vst.msk [vmem:[%s288 + $0xb8] sm:$0x3] %vm1631, %v1621
      %1681 = vst.msk [vmem:[%s288 + $0xc0] sm:$0xff] %vm1628, %v1623
      %1682 = vst.msk [vmem:[%s288 + $0xc8] sm:$0xff] %vm1628, %v1625
      %1683 = vst.msk [vmem:[%s288 + $0xd0] sm:$0x3] %vm1631, %v1627
      %v1684 = vmul.f32 %v1439, %v1575
      %v1685 = vmul.f32 %v1440, %v1577
      %v1686 = vmul.f32 %v1441, %v1579
      %v1687 = vmul.f32 %v1442, %v1581
      %v1688 = vmul.f32 %v1443, %v1583
      %v1689 = vmul.f32 %v1444, %v1585
      %v1690 = vmul.f32 %v1445, %v1587
      %v1691 = vmul.f32 %v1446, %v1589
      %v1692 = vmul.f32 %v1447, %v1591
      %v1693 = vmul.f32 %v1448, %v1593
      %v1694 = vmul.f32 %v1449, %v1595
      %v1695 = vmul.f32 %v1450, %v1597
      %v1696 = vmul.f32 %v1451, %v1599
      %v1697 = vmul.f32 %v1452, %v1601
      %v1698 = vmul.f32 %v1453, %v1603
      %v1699 = vmul.f32 %v1454, %v1605
      %v1700 = vmul.f32 %v1455, %v1607
      %v1701 = vmul.f32 %v1456, %v1609
      %v1702 = vmul.f32 %v1457, %v1611
      %v1703 = vmul.f32 %v1458, %v1613
      %v1704 = vmul.f32 %v1459, %v1615
      %v1705 = vmul.f32 %v1460, %v1617
      %v1706 = vmul.f32 %v1461, %v1619
      %v1707 = vmul.f32 %v1462, %v1621
      %v1708 = vmul.f32 %v1463, %v1623
      %v1709 = vmul.f32 %v1464, %v1625
      %v1710 = vmul.f32 %v1465, %v1627
      %1711 = vst.msk [vmem:[%s299] sm:$0xff] %vm1628, %v1684
      %1712 = vst.msk [vmem:[%s299 + $0x8] sm:$0xff] %vm1628, %v1685
      %1713 = vst.msk [vmem:[%s299 + $0x10] sm:$0x3] %vm1631, %v1686
      %1714 = vst.msk [vmem:[%s299 + $0x18] sm:$0xff] %vm1628, %v1687
      %1715 = vst.msk [vmem:[%s299 + $0x20] sm:$0xff] %vm1628, %v1688
      %1716 = vst.msk [vmem:[%s299 + $0x28] sm:$0x3] %vm1631, %v1689
      %1717 = vst.msk [vmem:[%s299 + $0x30] sm:$0xff] %vm1628, %v1690
      %1718 = vst.msk [vmem:[%s299 + $0x38] sm:$0xff] %vm1628, %v1691
      %1719 = vst.msk [vmem:[%s299 + $0x40] sm:$0x3] %vm1631, %v1692
      %1720 = vst.msk [vmem:[%s299 + $0x48] sm:$0xff] %vm1628, %v1693
      %1721 = vst.msk [vmem:[%s299 + $0x50] sm:$0xff] %vm1628, %v1694
      %1722 = vst.msk [vmem:[%s299 + $0x58] sm:$0x3] %vm1631, %v1695
      %1723 = vst.msk [vmem:[%s299 + $0x60] sm:$0xff] %vm1628, %v1696
      %1724 = vst.msk [vmem:[%s299 + $0x68] sm:$0xff] %vm1628, %v1697
      %1725 = vst.msk [vmem:[%s299 + $0x70] sm:$0x3] %vm1631, %v1698
      %1726 = vst.msk [vmem:[%s299 + $0x78] sm:$0xff] %vm1628, %v1699
      %1727 = vst.msk [vmem:[%s299 + $0x80] sm:$0xff] %vm1628, %v1700
      %1728 = vst.msk [vmem:[%s299 + $0x88] sm:$0x3] %vm1631, %v1701
      %1729 = vst.msk [vmem:[%s299 + $0x90] sm:$0xff] %vm1628, %v1702
      %1730 = vst.msk [vmem:[%s299 + $0x98] sm:$0xff] %vm1628, %v1703
      %1731 = vst.msk [vmem:[%s299 + $0xa0] sm:$0x3] %vm1631, %v1704
      %1732 = vst.msk [vmem:[%s299 + $0xa8] sm:$0xff] %vm1628, %v1705
      %1733 = vst.msk [vmem:[%s299 + $0xb0] sm:$0xff] %vm1628, %v1706
      %1734 = vst.msk [vmem:[%s299 + $0xb8] sm:$0x3] %vm1631, %v1707
      %1735 = vst.msk [vmem:[%s299 + $0xc0] sm:$0xff] %vm1628, %v1708
      %1736 = vst.msk [vmem:[%s299 + $0xc8] sm:$0xff] %vm1628, %v1709
      %1737 = vst.msk [vmem:[%s299 + $0xd0] sm:$0x3] %vm1631, %v1710
      %s1738 = smul.u32 9, %s22
      %p1739 = scmp.lt.s32.totalorder %s21, 1
      %s1740 = scalar_select %p1739, %s21, 1
      %p1741 = scmp.lt.s32.totalorder %s1738, 17
      %s1742 = scalar_select %p1741, %s1738, 17
      %s1743 = smul.addr %s1742, 3
      %s1744 = smul.addr %s1740, 54
      %s1745 = sadd.s32 %s1743, %s1744
      %s1746 = smul.addr %s1745, 8
      %s1747 = scalar_lea.vmem %s3, %s1746
      %s1748 = smul.u32 9, %s22
      %p1749 = scmp.lt.s32.totalorder %s21, 1
      %s1750 = scalar_select %p1749, %s21, 1
      %p1751 = scmp.lt.s32.totalorder %s1748, 17
      %s1752 = scalar_select %p1751, %s1748, 17
      %s1753 = smul.addr %s1752, 3
      %s1754 = smul.addr %s1750, 54
      %s1755 = sadd.s32 %s1753, %s1754
      %s1756 = smul.addr %s1755, 8
      %s1757 = scalar_lea.vmem %s4, %s1756
      %s1758 = smul.u32 9, %s22
      %p1759 = scmp.lt.s32.totalorder %s21, 1
      %s1760 = scalar_select %p1759, %s21, 1
      %p1761 = scmp.lt.s32.totalorder %s1758, 17
      %s1762 = scalar_select %p1761, %s1758, 17
      %s1763 = smul.addr %s1762, 3
      %s1764 = smul.addr %s1760, 54
      %s1765 = sadd.s32 %s1763, %s1764
      %s1766 = smul.addr %s1765, 8
      %s1767 = scalar_lea.vmem %s5, %s1766
      // Predicated region
      $region33: #{tpu_custom_call.1} parent=31 // pred_check
        %p1768 = pneg %p117
      $region34: #{tpu_custom_call.1} parent=31 // pred_check_branch
        %1770 = sbr.rel (%p1768) target = $region36
      $region35: #{tpu_custom_call.1} parent=31 // pred_region
        %s1771 = smul.u32 9, %s22
      $region36: #{tpu_custom_call.1} parent=31 // pred_fallthru
        _
      // Predicated region
      $region37: #{tpu_custom_call.1} parent=31 // pred_check
        %p1772 = pneg %p145
      $region38: #{tpu_custom_call.1} parent=31 // pred_check_branch
        %1774 = sbr.rel (%p1772) target = $region40
      $region39: #{tpu_custom_call.1} parent=31 // pred_region
        %s1775 = smul.u32 9, %s22
      $region40: #{tpu_custom_call.1} parent=31 // pred_fallthru
        _
      // Predicated region
      $region41: #{tpu_custom_call.1} parent=31 // pred_check
        %p1776 = pneg %p173
      $region42: #{tpu_custom_call.1} parent=31 // pred_check_branch
        %1778 = sbr.rel (%p1776) target = $region44
      $region43: #{tpu_custom_call.1} parent=31 // pred_region
        %s1779 = smul.u32 9, %s22
      $region44: #{tpu_custom_call.1} parent=31 // pred_fallthru
        _
    $region32: #{tpu_custom_call.1} parent=5 // pred_fallthru
      _
    %p1780 = scmp.le.s32.totalorder 2, %s12
    // Predicated region
    $region45: #{tpu_custom_call.1} parent=5 // pred_check
      %p1781 = pneg %p1780
    $region46: #{tpu_custom_call.1} parent=5 // pred_check_branch
      %1783 = sbr.rel (%p1781) target = $region48
    $region47: #{tpu_custom_call.1} parent=5 // pred_region
      %s1784 = ssub.s32 %s12, 2
      // Predicated region
      $region49: #{tpu_custom_call.1} parent=47 // pred_check
        %p1785 = pneg %p123
      $region50: #{tpu_custom_call.1} parent=47 // pred_check_branch
        %1787 = sbr.rel (%p1785) target = $region52
      $region51: #{tpu_custom_call.1} parent=47 // pred_region
        %s1788 = smul.u32 9, %s24
        %p1789 = scmp.lt.s32.totalorder %s23, 1
        %s1790 = scalar_select %p1789, %s23, 1
        %p1791 = scmp.lt.s32.totalorder %s1788, 17
        %s1792 = scalar_select %p1791, %s1788, 17
        %s1793 = smul.addr %s1792, 3
        %s1794 = smul.addr %s1790, 54
        %s1795 = sadd.s32 %s1793, %s1794
        %s1796 = smul.addr %s1795, 8
        %s1797 = scalar_lea.vmem %s3, %s1796
      $region52: #{tpu_custom_call.1} parent=47 // pred_fallthru
        _
      // Predicated region
      $region53: #{tpu_custom_call.1} parent=47 // pred_check
        %p1798 = pneg %p151
      $region54: #{tpu_custom_call.1} parent=47 // pred_check_branch
        %1800 = sbr.rel (%p1798) target = $region56
      $region55: #{tpu_custom_call.1} parent=47 // pred_region
        %s1801 = smul.u32 9, %s24
        %p1802 = scmp.lt.s32.totalorder %s23, 1
        %s1803 = scalar_select %p1802, %s23, 1
        %p1804 = scmp.lt.s32.totalorder %s1801, 17
        %s1805 = scalar_select %p1804, %s1801, 17
        %s1806 = smul.addr %s1805, 3
        %s1807 = smul.addr %s1803, 54
        %s1808 = sadd.s32 %s1806, %s1807
        %s1809 = smul.addr %s1808, 8
        %s1810 = scalar_lea.vmem %s4, %s1809
      $region56: #{tpu_custom_call.1} parent=47 // pred_fallthru
        _
      // Predicated region
      $region57: #{tpu_custom_call.1} parent=47 // pred_check
        %p1811 = pneg %p179
      $region58: #{tpu_custom_call.1} parent=47 // pred_check_branch
        %1813 = sbr.rel (%p1811) target = $region60
      $region59: #{tpu_custom_call.1} parent=47 // pred_region
        %s1814 = smul.u32 9, %s24
        %p1815 = scmp.lt.s32.totalorder %s23, 1
        %s1816 = scalar_select %p1815, %s23, 1
        %p1817 = scmp.lt.s32.totalorder %s1814, 17
        %s1818 = scalar_select %p1817, %s1814, 17
        %s1819 = smul.addr %s1818, 3
        %s1820 = smul.addr %s1816, 54
        %s1821 = sadd.s32 %s1819, %s1820
        %s1822 = smul.addr %s1821, 8
        %s1823 = scalar_lea.vmem %s5, %s1822
      $region60: #{tpu_custom_call.1} parent=47 // pred_fallthru
        _
    $region48: #{tpu_custom_call.1} parent=5 // pred_fallthru
      _
  $region6: #{tpu_custom_call.1} parent=0 // loop_footer
    %s16 = sadd.s32 1, %s12
  $region7: #{tpu_custom_call.1} parent=0 // loop_footer_branch
    %11 = sbr.rel target = $region3
  $region8: #{tpu_custom_call.1} parent=0 // loop_exit
    _

</llo_original>
